<compile_context>
chip_gen: v7x
topology: tpu7x:2x2x1
jax: 0.10.0
libtpu: 0.0.40
codegen_flags: <defaults>
</compile_context>

<pallas_src>
import jax
import jax.numpy as jnp
from jax import lax
from jax.experimental import pallas as pl
from jax.experimental.pallas import tpu as pltpu


def chord_encoder_kernel(x_ref, len_ref, wih_cat_ref, bias_ref,
                         whh_f_ref, whh_b_ref, wpf_ref, wpb_ref,
                         out_ref, gx_ref):
    # x_ref:       (T*Bp, D)  f32  time-major input, batch padded to sublane multiple, flattened
    # len_ref:     (Bp, 1)    i32  valid lengths (padded rows have length 0)
    # wih_cat_ref: (D, 8H)    f32  [W_ih_fwd | W_ih_bwd], transposed, fused along N
    # bias_ref:    (1, 8H)    f32  [b_ih+b_hh fwd | b_ih+b_hh bwd]
    # whh_f/b_ref: (H, 4H)    f32  hidden->gates weights (transposed)
    # wpf/wpb_ref: (H, H)     f32  projection weight halves (transposed)
    # out_ref:     (Bp, H)    f32
    # gx_ref:      (T*Bp, 8H) f32  VMEM scratch holding the hoisted input projection
    TB, D = x_ref.shape
    Bp = len_ref.shape[0]
    H = whh_f_ref.shape[0]
    G = 4 * H
    T = TB // Bp

    # ---- hoisted input projection: one big MXU matmul, bias folded in ----
    gx_ref[...] = (jnp.dot(x_ref[...], wih_cat_ref[...],
                           preferred_element_type=jnp.float32)
                   + bias_ref[...])

    lens = len_ref[...]                    # (Bp, 1) int32
    whh_f = whh_f_ref[...]
    whh_b = whh_b_ref[...]

    def lstm_update(gates, c):
        # PyTorch gate order along the 4H lanes: i, f, g, o.
        # Two full-width EUP calls, then lane slices of the results.
        sig = jax.nn.sigmoid(gates)        # (Bp, 4H)
        th = jnp.tanh(gates)               # (Bp, 4H)
        i_g = sig[:, 0:H]
        f_g = sig[:, H:2 * H]
        g_g = th[:, 2 * H:3 * H]
        o_g = sig[:, 3 * H:4 * H]
        c_new = f_g * c + i_g * g_g
        h_new = o_g * jnp.tanh(c_new)
        return h_new, c_new

    def step(s, carry):
        # Forward direction consumes time index s; backward consumes T-1-s.
        h_f, c_f, h_b, c_b = carry
        tb = T - 1 - s
        row_f = pl.multiple_of(s * Bp, Bp)
        row_b = pl.multiple_of(tb * Bp, Bp)
        gxf = gx_ref[pl.ds(row_f, Bp), :]                      # (Bp, 8H)
        gxb = gx_ref[pl.ds(row_b, Bp), :]                      # (Bp, 8H)
        gates_f = gxf[:, :G] + jnp.dot(h_f, whh_f, preferred_element_type=jnp.float32)
        gates_b = gxb[:, G:] + jnp.dot(h_b, whh_b, preferred_element_type=jnp.float32)
        hf_n, cf_n = lstm_update(gates_f, c_f)
        hb_n, cb_n = lstm_update(gates_b, c_b)
        # Packed-sequence masking: only update state while the timestep is valid.
        m_f = s < lens                                         # (Bp, 1)
        m_b = tb < lens
        return (jnp.where(m_f, hf_n, h_f), jnp.where(m_f, cf_n, c_f),
                jnp.where(m_b, hb_n, h_b), jnp.where(m_b, cb_n, c_b))

    zeros = jnp.zeros((Bp, H), jnp.float32)
    h_f, _, h_b, _ = lax.fori_loop(0, T, step, (zeros, zeros, zeros, zeros),
                                   unroll=True)

    # proj(cat([h_f, h_b])) without the lane concat: split weight, two matmuls.
    out_ref[...] = (jnp.dot(h_f, wpf_ref[...], preferred_element_type=jnp.float32)
                    + jnp.dot(h_b, wpb_ref[...], preferred_element_type=jnp.float32))
    # TODO(synk): nn.Dropout(drop_prob) is the identity here (p=0.0 / eval mode).


def chord_encoder_forward(x, lengths, params):
    """x: (B, T, D) float32, lengths: (B,) int32. Returns (B, H) in length-sorted order."""
    B, T, D = x.shape
    H = params["whh_f"].shape[1]
    Bp = ((B + 7) // 8) * 8                                    # pad batch to full sublanes

    # Sort by lengths descending (matches torch .sort(0, descending=True); lengths unique here).
    order = jnp.argsort(-lengths)
    x_sorted = x[order]
    len_sorted = lengths[order].astype(jnp.int32)

    # Pad batch; padded rows get length 0 so they never update state, and are sliced off after.
    x_pad = jnp.pad(x_sorted, ((0, Bp - B), (0, 0), (0, 0)))
    len_pad = jnp.pad(len_sorted, (0, Bp - B)).reshape(Bp, 1)

    # Time-major, flattened for the hoisted input projection.
    x_tm = jnp.transpose(x_pad, (1, 0, 2)).reshape(T * Bp, D)  # (T*Bp, D)

    # Pre-transpose / fuse weights so the kernel only does (M,K)@(K,N) matmuls on the MXU.
    wih_cat = jnp.concatenate([params["wih_f"].T, params["wih_b"].T], axis=1)   # (D, 8H)
    bias_cat = jnp.concatenate([params["bih_f"] + params["bhh_f"],
                                params["bih_b"] + params["bhh_b"]]).reshape(1, 8 * H)
    whh_f_t = params["whh_f"].T                                 # (H, 4H)
    whh_b_t = params["whh_b"].T                                 # (H, 4H)
    wproj = params["wproj"]                                     # (H, 2H)
    wp_f = wproj[:, :H].T                                       # (H, H)
    wp_b = wproj[:, H:].T                                       # (H, H)

    vmem = pl.BlockSpec(memory_space=pltpu.MemorySpace.VMEM)
    out = pl.pallas_call(
        chord_encoder_kernel,
        out_shape=jax.ShapeDtypeStruct((Bp, H), jnp.float32),
        in_specs=[vmem] * 8,
        out_specs=vmem,
        scratch_shapes=[pltpu.VMEM((T * Bp, 8 * H), jnp.float32)],
    )(x_tm, len_pad, wih_cat, bias_cat, whh_f_t, whh_b_t, wp_f, wp_b)
    return out[:B]


def _reference_forward(x, lengths, params):
    """Pure-JAX reference (same math, no Pallas) for validation."""
    B, T, D = x.shape
    H = params["whh_f"].shape[1]
    order = jnp.argsort(-lengths)
    xs = x[order]
    ls = lengths[order]

    def cell(x_t, h, c, wih, whh, bias):
        gates = x_t @ wih.T + h @ whh.T + bias
        i_g = jax.nn.sigmoid(gates[:, 0 * H:1 * H])
        f_g = jax.nn.sigmoid(gates[:, 1 * H:2 * H])
        g_g = jnp.tanh(gates[:, 2 * H:3 * H])
        o_g = jax.nn.sigmoid(gates[:, 3 * H:4 * H])
        c_new = f_g * c + i_g * g_g
        return o_g * jnp.tanh(c_new), c_new

    def run(dir_range, wih, whh, bias):
        h = jnp.zeros((B, H), jnp.float32)
        c = jnp.zeros((B, H), jnp.float32)
        for t in dir_range:
            h_n, c_n = cell(xs[:, t, :], h, c, wih, whh, bias)
            m = (t < ls)[:, None]
            h = jnp.where(m, h_n, h)
            c = jnp.where(m, c_n, c)
        return h

    b_f = params["bih_f"] + params["bhh_f"]
    b_b = params["bih_b"] + params["bhh_b"]
    h_f = run(range(T), params["wih_f"], params["whh_f"], b_f)
    h_b = run(range(T - 1, -1, -1), params["wih_b"], params["whh_b"], b_b)
    return jnp.concatenate([h_f, h_b], axis=1) @ params["wproj"].T


def init_params(key, input_size, hidden_size):
    """Deterministic init mirroring PyTorch's uniform(-1/sqrt(H), 1/sqrt(H)) LSTM init."""
    H, D = hidden_size, input_size
    k_lstm = 1.0 / jnp.sqrt(H)
    k_proj = 1.0 / jnp.sqrt(2 * H)
    keys = jax.random.split(key, 9)

    def u(k, shape, scale):
        return jax.random.uniform(k, shape, jnp.float32, -scale, scale)

    return {
        "wih_f": u(keys[0], (4 * H, D), k_lstm),
        "whh_f": u(keys[1], (4 * H, H), k_lstm),
        "bih_f": u(keys[2], (4 * H,), k_lstm),
        "bhh_f": u(keys[3], (4 * H,), k_lstm),
        "wih_b": u(keys[4], (4 * H, D), k_lstm),
        "whh_b": u(keys[5], (4 * H, H), k_lstm),
        "bih_b": u(keys[6], (4 * H,), k_lstm),
        "bhh_b": u(keys[7], (4 * H,), k_lstm),
        "wproj": u(keys[8], (H, 2 * H), k_proj),
    }


if __name__ == "__main__":
    B, T, D, H = 4, 8, 16, 32
    key = jax.random.PRNGKey(0)
    k_x, k_p = jax.random.split(key)

    x = jax.random.normal(k_x, (B, T, D), jnp.float32)
    lengths = jnp.array([5, 8, 3, 6], dtype=jnp.int32)      # distinct lengths
    params = init_params(k_p, D, H)

    out = chord_encoder_forward(x, lengths, params)
    out = jax.block_until_ready(out)

    ref = _reference_forward(x, lengths, params)
    assert out.shape == (B, H)
    assert jnp.allclose(out, ref, atol=1e-4, rtol=1e-4), "Pallas kernel mismatch vs reference"

    print("KERNEL_OK")
</pallas_src>

<mosaic_0001>
module attributes {stable_mosaic.version = 11 : i64} {
  func.func @chord_encoder_kernel(%arg0: memref<64x16xf32, #tpu.memory_space<vmem>>, %arg1: memref<8x1xi32, #tpu.memory_space<vmem>>, %arg2: memref<16x256xf32, #tpu.memory_space<vmem>>, %arg3: memref<1x256xf32, #tpu.memory_space<vmem>>, %arg4: memref<32x128xf32, #tpu.memory_space<vmem>>, %arg5: memref<32x128xf32, #tpu.memory_space<vmem>>, %arg6: memref<32x32xf32, #tpu.memory_space<vmem>>, %arg7: memref<32x32xf32, #tpu.memory_space<vmem>>, %arg8: memref<8x32xf32, #tpu.memory_space<vmem>>, %arg9: memref<64x256xf32, #tpu.memory_space<vmem>>) attributes {dimension_semantics = [], scalar_prefetch = 0 : i64, scratch_operands = 1 : i64, tpu.core_type = #tpu.core_type<tc>} {
    %c0 = arith.constant 0 : index
    %c0_0 = arith.constant 0 : index
    %0 = vector.load %arg0[%c0, %c0_0] : memref<64x16xf32, #tpu.memory_space<vmem>>, vector<64x16xf32>
    %c0_1 = arith.constant 0 : index
    %c0_2 = arith.constant 0 : index
    %1 = vector.load %arg2[%c0_1, %c0_2] : memref<16x256xf32, #tpu.memory_space<vmem>>, vector<16x256xf32>
    %cst = arith.constant dense<0.000000e+00> : vector<64x256xf32>
    %2 = tpu.matmul %0, %1, %cst {dimension_numbers = #tpu.dot_dimension_numbers<[1], [0], [0], [1], [0, 0, 1, 1], [], []>} : vector<64x16xf32>, vector<16x256xf32>, vector<64x256xf32> -> vector<64x256xf32>
    %c0_3 = arith.constant 0 : index
    %c0_4 = arith.constant 0 : index
    %3 = vector.load %arg3[%c0_3, %c0_4] : memref<1x256xf32, #tpu.memory_space<vmem>>, vector<1x256xf32>
    %4 = vector.broadcast %3 : vector<1x256xf32> to vector<64x256xf32>
    %5 = arith.addf %2, %4 : vector<64x256xf32>
    %c0_5 = arith.constant 0 : index
    %c0_6 = arith.constant 0 : index
    %6 = vector.load %arg9[%c0_5, %c0_6] : memref<64x256xf32, #tpu.memory_space<vmem>>, vector<64x256xf32>
    tpu.vector_store %arg9[%c0_5, %c0_6], %5 {strides = array<i32>} : memref<64x256xf32, #tpu.memory_space<vmem>>, vector<64x256xf32>,
    %c0_7 = arith.constant 0 : index
    %c0_8 = arith.constant 0 : index
    %7 = vector.load %arg1[%c0_7, %c0_8] : memref<8x1xi32, #tpu.memory_space<vmem>>, vector<8x1xi32>
    %c0_9 = arith.constant 0 : index
    %c0_10 = arith.constant 0 : index
    %8 = vector.load %arg4[%c0_9, %c0_10] : memref<32x128xf32, #tpu.memory_space<vmem>>, vector<32x128xf32>
    %c0_11 = arith.constant 0 : index
    %c0_12 = arith.constant 0 : index
    %9 = vector.load %arg5[%c0_11, %c0_12] : memref<32x128xf32, #tpu.memory_space<vmem>>, vector<32x128xf32>
    %cst_13 = arith.constant 0.000000e+00 : f32
    %10 = vector.broadcast %cst_13 : f32 to vector<8x32xf32>
    %c0_i32 = arith.constant 0 : i32
    %c7_i32 = arith.constant 7 : i32
    %11 = arith.subi %c7_i32, %c0_i32 : i32
    %c8_i32 = arith.constant 8 : i32
    %12 = arith.muli %c0_i32, %c8_i32 : i32
    %13 = tpu.assume_multiple %12, 8 : i32
    %c8_i32_14 = arith.constant 8 : i32
    %14 = arith.muli %11, %c8_i32_14 : i32
    %15 = tpu.assume_multiple %14, 8 : i32
    %16 = arith.index_cast %13 : i32 to index
    %c0_15 = arith.constant 0 : index
    %17 = vector.load %arg9[%16, %c0_15] : memref<64x256xf32, #tpu.memory_space<vmem>>, vector<8x256xf32>
    %18 = arith.index_cast %15 : i32 to index
    %c0_16 = arith.constant 0 : index
    %19 = vector.load %arg9[%18, %c0_16] : memref<64x256xf32, #tpu.memory_space<vmem>>, vector<8x256xf32>
    %20 = vector.extract_strided_slice %17 {offsets = [0, 0], sizes = [8, 128], strides = [1, 1]} : vector<8x256xf32> to vector<8x128xf32>
    %cst_17 = arith.constant dense<0.000000e+00> : vector<8x128xf32>
    %21 = tpu.matmul %10, %8, %cst_17 {dimension_numbers = #tpu.dot_dimension_numbers<[1], [0], [0], [1], [0, 0, 1, 1], [], []>} : vector<8x32xf32>, vector<32x128xf32>, vector<8x128xf32> -> vector<8x128xf32>
    %22 = arith.addf %20, %21 : vector<8x128xf32>
    %23 = vector.extract_strided_slice %19 {offsets = [0, 128], sizes = [8, 128], strides = [1, 1]} : vector<8x256xf32> to vector<8x128xf32>
    %cst_18 = arith.constant dense<0.000000e+00> : vector<8x128xf32>
    %24 = tpu.matmul %10, %9, %cst_18 {dimension_numbers = #tpu.dot_dimension_numbers<[1], [0], [0], [1], [0, 0, 1, 1], [], []>} : vector<8x32xf32>, vector<32x128xf32>, vector<8x128xf32> -> vector<8x128xf32>
    %25 = arith.addf %23, %24 : vector<8x128xf32>
    %26 = arith.negf %22 : vector<8x128xf32>
    %27 = math.exp %26 : vector<8x128xf32>
    %cst_19 = arith.constant 1.000000e+00 : f32
    %28 = vector.broadcast %cst_19 : f32 to vector<8x128xf32>
    %29 = arith.addf %28, %27 : vector<8x128xf32>
    %30 = arith.divf %28, %29 : vector<8x128xf32>
    %31 = math.tanh %22 : vector<8x128xf32>
    %32 = vector.extract_strided_slice %30 {offsets = [0, 0], sizes = [8, 32], strides = [1, 1]} : vector<8x128xf32> to vector<8x32xf32>
    %33 = vector.extract_strided_slice %30 {offsets = [0, 32], sizes = [8, 32], strides = [1, 1]} : vector<8x128xf32> to vector<8x32xf32>
    %34 = vector.extract_strided_slice %31 {offsets = [0, 64], sizes = [8, 32], strides = [1, 1]} : vector<8x128xf32> to vector<8x32xf32>
    %35 = vector.extract_strided_slice %30 {offsets = [0, 96], sizes = [8, 32], strides = [1, 1]} : vector<8x128xf32> to vector<8x32xf32>
    %36 = arith.mulf %33, %10 : vector<8x32xf32>
    %37 = arith.mulf %32, %34 : vector<8x32xf32>
    %38 = arith.addf %36, %37 : vector<8x32xf32>
    %39 = math.tanh %38 : vector<8x32xf32>
    %40 = arith.mulf %35, %39 : vector<8x32xf32>
    %41 = arith.negf %25 : vector<8x128xf32>
    %42 = math.exp %41 : vector<8x128xf32>
    %cst_20 = arith.constant 1.000000e+00 : f32
    %43 = vector.broadcast %cst_20 : f32 to vector<8x128xf32>
    %44 = arith.addf %43, %42 : vector<8x128xf32>
    %45 = arith.divf %43, %44 : vector<8x128xf32>
    %46 = math.tanh %25 : vector<8x128xf32>
    %47 = vector.extract_strided_slice %45 {offsets = [0, 0], sizes = [8, 32], strides = [1, 1]} : vector<8x128xf32> to vector<8x32xf32>
    %48 = vector.extract_strided_slice %45 {offsets = [0, 32], sizes = [8, 32], strides = [1, 1]} : vector<8x128xf32> to vector<8x32xf32>
    %49 = vector.extract_strided_slice %46 {offsets = [0, 64], sizes = [8, 32], strides = [1, 1]} : vector<8x128xf32> to vector<8x32xf32>
    %50 = vector.extract_strided_slice %45 {offsets = [0, 96], sizes = [8, 32], strides = [1, 1]} : vector<8x128xf32> to vector<8x32xf32>
    %51 = arith.mulf %48, %10 : vector<8x32xf32>
    %52 = arith.mulf %47, %49 : vector<8x32xf32>
    %53 = arith.addf %51, %52 : vector<8x32xf32>
    %54 = math.tanh %53 : vector<8x32xf32>
    %55 = arith.mulf %50, %54 : vector<8x32xf32>
    %56 = vector.broadcast %c0_i32 : i32 to vector<8x1xi32>
    %57 = arith.cmpi slt, %56, %7 : vector<8x1xi32>
    %58 = vector.broadcast %11 : i32 to vector<8x1xi32>
    %59 = arith.cmpi slt, %58, %7 : vector<8x1xi32>
    %60 = vector.shape_cast %57 : vector<8x1xi1> to vector<8x1xi1>
    %61 = vector.broadcast %60 : vector<8x1xi1> to vector<8x32xi1>
    %62 = arith.select %61, %40, %10 : vector<8x32xi1>, vector<8x32xf32>
    %63 = vector.shape_cast %57 : vector<8x1xi1> to vector<8x1xi1>
    %64 = vector.broadcast %63 : vector<8x1xi1> to vector<8x32xi1>
    %65 = arith.select %64, %38, %10 : vector<8x32xi1>, vector<8x32xf32>
    %66 = vector.shape_cast %59 : vector<8x1xi1> to vector<8x1xi1>
    %67 = vector.broadcast %66 : vector<8x1xi1> to vector<8x32xi1>
    %68 = arith.select %67, %55, %10 : vector<8x32xi1>, vector<8x32xf32>
    %69 = vector.shape_cast %59 : vector<8x1xi1> to vector<8x1xi1>
    %70 = vector.broadcast %69 : vector<8x1xi1> to vector<8x32xi1>
    %71 = arith.select %70, %53, %10 : vector<8x32xi1>, vector<8x32xf32>
    %c1_i32 = arith.constant 1 : i32
    %c7_i32_21 = arith.constant 7 : i32
    %72 = arith.subi %c7_i32_21, %c1_i32 : i32
    %c8_i32_22 = arith.constant 8 : i32
    %73 = arith.muli %c1_i32, %c8_i32_22 : i32
    %74 = tpu.assume_multiple %73, 8 : i32
    %c8_i32_23 = arith.constant 8 : i32
    %75 = arith.muli %72, %c8_i32_23 : i32
    %76 = tpu.assume_multiple %75, 8 : i32
    %77 = arith.index_cast %74 : i32 to index
    %c0_24 = arith.constant 0 : index
    %78 = vector.load %arg9[%77, %c0_24] : memref<64x256xf32, #tpu.memory_space<vmem>>, vector<8x256xf32>
    %79 = arith.index_cast %76 : i32 to index
    %c0_25 = arith.constant 0 : index
    %80 = vector.load %arg9[%79, %c0_25] : memref<64x256xf32, #tpu.memory_space<vmem>>, vector<8x256xf32>
    %81 = vector.extract_strided_slice %78 {offsets = [0, 0], sizes = [8, 128], strides = [1, 1]} : vector<8x256xf32> to vector<8x128xf32>
    %cst_26 = arith.constant dense<0.000000e+00> : vector<8x128xf32>
    %82 = tpu.matmul %62, %8, %cst_26 {dimension_numbers = #tpu.dot_dimension_numbers<[1], [0], [0], [1], [0, 0, 1, 1], [], []>} : vector<8x32xf32>, vector<32x128xf32>, vector<8x128xf32> -> vector<8x128xf32>
    %83 = arith.addf %81, %82 : vector<8x128xf32>
    %84 = vector.extract_strided_slice %80 {offsets = [0, 128], sizes = [8, 128], strides = [1, 1]} : vector<8x256xf32> to vector<8x128xf32>
    %cst_27 = arith.constant dense<0.000000e+00> : vector<8x128xf32>
    %85 = tpu.matmul %68, %9, %cst_27 {dimension_numbers = #tpu.dot_dimension_numbers<[1], [0], [0], [1], [0, 0, 1, 1], [], []>} : vector<8x32xf32>, vector<32x128xf32>, vector<8x128xf32> -> vector<8x128xf32>
    %86 = arith.addf %84, %85 : vector<8x128xf32>
    %87 = arith.negf %83 : vector<8x128xf32>
    %88 = math.exp %87 : vector<8x128xf32>
    %cst_28 = arith.constant 1.000000e+00 : f32
    %89 = vector.broadcast %cst_28 : f32 to vector<8x128xf32>
    %90 = arith.addf %89, %88 : vector<8x128xf32>
    %91 = arith.divf %89, %90 : vector<8x128xf32>
    %92 = math.tanh %83 : vector<8x128xf32>
    %93 = vector.extract_strided_slice %91 {offsets = [0, 0], sizes = [8, 32], strides = [1, 1]} : vector<8x128xf32> to vector<8x32xf32>
    %94 = vector.extract_strided_slice %91 {offsets = [0, 32], sizes = [8, 32], strides = [1, 1]} : vector<8x128xf32> to vector<8x32xf32>
    %95 = vector.extract_strided_slice %92 {offsets = [0, 64], sizes = [8, 32], strides = [1, 1]} : vector<8x128xf32> to vector<8x32xf32>
    %96 = vector.extract_strided_slice %91 {offsets = [0, 96], sizes = [8, 32], strides = [1, 1]} : vector<8x128xf32> to vector<8x32xf32>
    %97 = arith.mulf %94, %65 : vector<8x32xf32>
    %98 = arith.mulf %93, %95 : vector<8x32xf32>
    %99 = arith.addf %97, %98 : vector<8x32xf32>
    %100 = math.tanh %99 : vector<8x32xf32>
    %101 = arith.mulf %96, %100 : vector<8x32xf32>
    %102 = arith.negf %86 : vector<8x128xf32>
    %103 = math.exp %102 : vector<8x128xf32>
    %cst_29 = arith.constant 1.000000e+00 : f32
    %104 = vector.broadcast %cst_29 : f32 to vector<8x128xf32>
    %105 = arith.addf %104, %103 : vector<8x128xf32>
    %106 = arith.divf %104, %105 : vector<8x128xf32>
    %107 = math.tanh %86 : vector<8x128xf32>
    %108 = vector.extract_strided_slice %106 {offsets = [0, 0], sizes = [8, 32], strides = [1, 1]} : vector<8x128xf32> to vector<8x32xf32>
    %109 = vector.extract_strided_slice %106 {offsets = [0, 32], sizes = [8, 32], strides = [1, 1]} : vector<8x128xf32> to vector<8x32xf32>
    %110 = vector.extract_strided_slice %107 {offsets = [0, 64], sizes = [8, 32], strides = [1, 1]} : vector<8x128xf32> to vector<8x32xf32>
    %111 = vector.extract_strided_slice %106 {offsets = [0, 96], sizes = [8, 32], strides = [1, 1]} : vector<8x128xf32> to vector<8x32xf32>
    %112 = arith.mulf %109, %71 : vector<8x32xf32>
    %113 = arith.mulf %108, %110 : vector<8x32xf32>
    %114 = arith.addf %112, %113 : vector<8x32xf32>
    %115 = math.tanh %114 : vector<8x32xf32>
    %116 = arith.mulf %111, %115 : vector<8x32xf32>
    %117 = vector.broadcast %c1_i32 : i32 to vector<8x1xi32>
    %118 = arith.cmpi slt, %117, %7 : vector<8x1xi32>
    %119 = vector.broadcast %72 : i32 to vector<8x1xi32>
    %120 = arith.cmpi slt, %119, %7 : vector<8x1xi32>
    %121 = vector.shape_cast %118 : vector<8x1xi1> to vector<8x1xi1>
    %122 = vector.broadcast %121 : vector<8x1xi1> to vector<8x32xi1>
    %123 = arith.select %122, %101, %62 : vector<8x32xi1>, vector<8x32xf32>
    %124 = vector.shape_cast %118 : vector<8x1xi1> to vector<8x1xi1>
    %125 = vector.broadcast %124 : vector<8x1xi1> to vector<8x32xi1>
    %126 = arith.select %125, %99, %65 : vector<8x32xi1>, vector<8x32xf32>
    %127 = vector.shape_cast %120 : vector<8x1xi1> to vector<8x1xi1>
    %128 = vector.broadcast %127 : vector<8x1xi1> to vector<8x32xi1>
    %129 = arith.select %128, %116, %68 : vector<8x32xi1>, vector<8x32xf32>
    %130 = vector.shape_cast %120 : vector<8x1xi1> to vector<8x1xi1>
    %131 = vector.broadcast %130 : vector<8x1xi1> to vector<8x32xi1>
    %132 = arith.select %131, %114, %71 : vector<8x32xi1>, vector<8x32xf32>
    %c2_i32 = arith.constant 2 : i32
    %c7_i32_30 = arith.constant 7 : i32
    %133 = arith.subi %c7_i32_30, %c2_i32 : i32
    %c8_i32_31 = arith.constant 8 : i32
    %134 = arith.muli %c2_i32, %c8_i32_31 : i32
    %135 = tpu.assume_multiple %134, 8 : i32
    %c8_i32_32 = arith.constant 8 : i32
    %136 = arith.muli %133, %c8_i32_32 : i32
    %137 = tpu.assume_multiple %136, 8 : i32
    %138 = arith.index_cast %135 : i32 to index
    %c0_33 = arith.constant 0 : index
    %139 = vector.load %arg9[%138, %c0_33] : memref<64x256xf32, #tpu.memory_space<vmem>>, vector<8x256xf32>
    %140 = arith.index_cast %137 : i32 to index
    %c0_34 = arith.constant 0 : index
    %141 = vector.load %arg9[%140, %c0_34] : memref<64x256xf32, #tpu.memory_space<vmem>>, vector<8x256xf32>
    %142 = vector.extract_strided_slice %139 {offsets = [0, 0], sizes = [8, 128], strides = [1, 1]} : vector<8x256xf32> to vector<8x128xf32>
    %cst_35 = arith.constant dense<0.000000e+00> : vector<8x128xf32>
    %143 = tpu.matmul %123, %8, %cst_35 {dimension_numbers = #tpu.dot_dimension_numbers<[1], [0], [0], [1], [0, 0, 1, 1], [], []>} : vector<8x32xf32>, vector<32x128xf32>, vector<8x128xf32> -> vector<8x128xf32>
    %144 = arith.addf %142, %143 : vector<8x128xf32>
    %145 = vector.extract_strided_slice %141 {offsets = [0, 128], sizes = [8, 128], strides = [1, 1]} : vector<8x256xf32> to vector<8x128xf32>
    %cst_36 = arith.constant dense<0.000000e+00> : vector<8x128xf32>
    %146 = tpu.matmul %129, %9, %cst_36 {dimension_numbers = #tpu.dot_dimension_numbers<[1], [0], [0], [1], [0, 0, 1, 1], [], []>} : vector<8x32xf32>, vector<32x128xf32>, vector<8x128xf32> -> vector<8x128xf32>
    %147 = arith.addf %145, %146 : vector<8x128xf32>
    %148 = arith.negf %144 : vector<8x128xf32>
    %149 = math.exp %148 : vector<8x128xf32>
    %cst_37 = arith.constant 1.000000e+00 : f32
    %150 = vector.broadcast %cst_37 : f32 to vector<8x128xf32>
    %151 = arith.addf %150, %149 : vector<8x128xf32>
    %152 = arith.divf %150, %151 : vector<8x128xf32>
    %153 = math.tanh %144 : vector<8x128xf32>
    %154 = vector.extract_strided_slice %152 {offsets = [0, 0], sizes = [8, 32], strides = [1, 1]} : vector<8x128xf32> to vector<8x32xf32>
    %155 = vector.extract_strided_slice %152 {offsets = [0, 32], sizes = [8, 32], strides = [1, 1]} : vector<8x128xf32> to vector<8x32xf32>
    %156 = vector.extract_strided_slice %153 {offsets = [0, 64], sizes = [8, 32], strides = [1, 1]} : vector<8x128xf32> to vector<8x32xf32>
    %157 = vector.extract_strided_slice %152 {offsets = [0, 96], sizes = [8, 32], strides = [1, 1]} : vector<8x128xf32> to vector<8x32xf32>
    %158 = arith.mulf %155, %126 : vector<8x32xf32>
    %159 = arith.mulf %154, %156 : vector<8x32xf32>
    %160 = arith.addf %158, %159 : vector<8x32xf32>
    %161 = math.tanh %160 : vector<8x32xf32>
    %162 = arith.mulf %157, %161 : vector<8x32xf32>
    %163 = arith.negf %147 : vector<8x128xf32>
    %164 = math.exp %163 : vector<8x128xf32>
    %cst_38 = arith.constant 1.000000e+00 : f32
    %165 = vector.broadcast %cst_38 : f32 to vector<8x128xf32>
    %166 = arith.addf %165, %164 : vector<8x128xf32>
    %167 = arith.divf %165, %166 : vector<8x128xf32>
    %168 = math.tanh %147 : vector<8x128xf32>
    %169 = vector.extract_strided_slice %167 {offsets = [0, 0], sizes = [8, 32], strides = [1, 1]} : vector<8x128xf32> to vector<8x32xf32>
    %170 = vector.extract_strided_slice %167 {offsets = [0, 32], sizes = [8, 32], strides = [1, 1]} : vector<8x128xf32> to vector<8x32xf32>
    %171 = vector.extract_strided_slice %168 {offsets = [0, 64], sizes = [8, 32], strides = [1, 1]} : vector<8x128xf32> to vector<8x32xf32>
    %172 = vector.extract_strided_slice %167 {offsets = [0, 96], sizes = [8, 32], strides = [1, 1]} : vector<8x128xf32> to vector<8x32xf32>
    %173 = arith.mulf %170, %132 : vector<8x32xf32>
    %174 = arith.mulf %169, %171 : vector<8x32xf32>
    %175 = arith.addf %173, %174 : vector<8x32xf32>
    %176 = math.tanh %175 : vector<8x32xf32>
    %177 = arith.mulf %172, %176 : vector<8x32xf32>
    %178 = vector.broadcast %c2_i32 : i32 to vector<8x1xi32>
    %179 = arith.cmpi slt, %178, %7 : vector<8x1xi32>
    %180 = vector.broadcast %133 : i32 to vector<8x1xi32>
    %181 = arith.cmpi slt, %180, %7 : vector<8x1xi32>
    %182 = vector.shape_cast %179 : vector<8x1xi1> to vector<8x1xi1>
    %183 = vector.broadcast %182 : vector<8x1xi1> to vector<8x32xi1>
    %184 = arith.select %183, %162, %123 : vector<8x32xi1>, vector<8x32xf32>
    %185 = vector.shape_cast %179 : vector<8x1xi1> to vector<8x1xi1>
    %186 = vector.broadcast %185 : vector<8x1xi1> to vector<8x32xi1>
    %187 = arith.select %186, %160, %126 : vector<8x32xi1>, vector<8x32xf32>
    %188 = vector.shape_cast %181 : vector<8x1xi1> to vector<8x1xi1>
    %189 = vector.broadcast %188 : vector<8x1xi1> to vector<8x32xi1>
    %190 = arith.select %189, %177, %129 : vector<8x32xi1>, vector<8x32xf32>
    %191 = vector.shape_cast %181 : vector<8x1xi1> to vector<8x1xi1>
    %192 = vector.broadcast %191 : vector<8x1xi1> to vector<8x32xi1>
    %193 = arith.select %192, %175, %132 : vector<8x32xi1>, vector<8x32xf32>
    %c3_i32 = arith.constant 3 : i32
    %c7_i32_39 = arith.constant 7 : i32
    %194 = arith.subi %c7_i32_39, %c3_i32 : i32
    %c8_i32_40 = arith.constant 8 : i32
    %195 = arith.muli %c3_i32, %c8_i32_40 : i32
    %196 = tpu.assume_multiple %195, 8 : i32
    %c8_i32_41 = arith.constant 8 : i32
    %197 = arith.muli %194, %c8_i32_41 : i32
    %198 = tpu.assume_multiple %197, 8 : i32
    %199 = arith.index_cast %196 : i32 to index
    %c0_42 = arith.constant 0 : index
    %200 = vector.load %arg9[%199, %c0_42] : memref<64x256xf32, #tpu.memory_space<vmem>>, vector<8x256xf32>
    %201 = arith.index_cast %198 : i32 to index
    %c0_43 = arith.constant 0 : index
    %202 = vector.load %arg9[%201, %c0_43] : memref<64x256xf32, #tpu.memory_space<vmem>>, vector<8x256xf32>
    %203 = vector.extract_strided_slice %200 {offsets = [0, 0], sizes = [8, 128], strides = [1, 1]} : vector<8x256xf32> to vector<8x128xf32>
    %cst_44 = arith.constant dense<0.000000e+00> : vector<8x128xf32>
    %204 = tpu.matmul %184, %8, %cst_44 {dimension_numbers = #tpu.dot_dimension_numbers<[1], [0], [0], [1], [0, 0, 1, 1], [], []>} : vector<8x32xf32>, vector<32x128xf32>, vector<8x128xf32> -> vector<8x128xf32>
    %205 = arith.addf %203, %204 : vector<8x128xf32>
    %206 = vector.extract_strided_slice %202 {offsets = [0, 128], sizes = [8, 128], strides = [1, 1]} : vector<8x256xf32> to vector<8x128xf32>
    %cst_45 = arith.constant dense<0.000000e+00> : vector<8x128xf32>
    %207 = tpu.matmul %190, %9, %cst_45 {dimension_numbers = #tpu.dot_dimension_numbers<[1], [0], [0], [1], [0, 0, 1, 1], [], []>} : vector<8x32xf32>, vector<32x128xf32>, vector<8x128xf32> -> vector<8x128xf32>
    %208 = arith.addf %206, %207 : vector<8x128xf32>
    %209 = arith.negf %205 : vector<8x128xf32>
    %210 = math.exp %209 : vector<8x128xf32>
    %cst_46 = arith.constant 1.000000e+00 : f32
    %211 = vector.broadcast %cst_46 : f32 to vector<8x128xf32>
    %212 = arith.addf %211, %210 : vector<8x128xf32>
    %213 = arith.divf %211, %212 : vector<8x128xf32>
    %214 = math.tanh %205 : vector<8x128xf32>
    %215 = vector.extract_strided_slice %213 {offsets = [0, 0], sizes = [8, 32], strides = [1, 1]} : vector<8x128xf32> to vector<8x32xf32>
    %216 = vector.extract_strided_slice %213 {offsets = [0, 32], sizes = [8, 32], strides = [1, 1]} : vector<8x128xf32> to vector<8x32xf32>
    %217 = vector.extract_strided_slice %214 {offsets = [0, 64], sizes = [8, 32], strides = [1, 1]} : vector<8x128xf32> to vector<8x32xf32>
    %218 = vector.extract_strided_slice %213 {offsets = [0, 96], sizes = [8, 32], strides = [1, 1]} : vector<8x128xf32> to vector<8x32xf32>
    %219 = arith.mulf %216, %187 : vector<8x32xf32>
    %220 = arith.mulf %215, %217 : vector<8x32xf32>
    %221 = arith.addf %219, %220 : vector<8x32xf32>
    %222 = math.tanh %221 : vector<8x32xf32>
    %223 = arith.mulf %218, %222 : vector<8x32xf32>
    %224 = arith.negf %208 : vector<8x128xf32>
    %225 = math.exp %224 : vector<8x128xf32>
    %cst_47 = arith.constant 1.000000e+00 : f32
    %226 = vector.broadcast %cst_47 : f32 to vector<8x128xf32>
    %227 = arith.addf %226, %225 : vector<8x128xf32>
    %228 = arith.divf %226, %227 : vector<8x128xf32>
    %229 = math.tanh %208 : vector<8x128xf32>
    %230 = vector.extract_strided_slice %228 {offsets = [0, 0], sizes = [8, 32], strides = [1, 1]} : vector<8x128xf32> to vector<8x32xf32>
    %231 = vector.extract_strided_slice %228 {offsets = [0, 32], sizes = [8, 32], strides = [1, 1]} : vector<8x128xf32> to vector<8x32xf32>
    %232 = vector.extract_strided_slice %229 {offsets = [0, 64], sizes = [8, 32], strides = [1, 1]} : vector<8x128xf32> to vector<8x32xf32>
    %233 = vector.extract_strided_slice %228 {offsets = [0, 96], sizes = [8, 32], strides = [1, 1]} : vector<8x128xf32> to vector<8x32xf32>
    %234 = arith.mulf %231, %193 : vector<8x32xf32>
    %235 = arith.mulf %230, %232 : vector<8x32xf32>
    %236 = arith.addf %234, %235 : vector<8x32xf32>
    %237 = math.tanh %236 : vector<8x32xf32>
    %238 = arith.mulf %233, %237 : vector<8x32xf32>
    %239 = vector.broadcast %c3_i32 : i32 to vector<8x1xi32>
    %240 = arith.cmpi slt, %239, %7 : vector<8x1xi32>
    %241 = vector.broadcast %194 : i32 to vector<8x1xi32>
    %242 = arith.cmpi slt, %241, %7 : vector<8x1xi32>
    %243 = vector.shape_cast %240 : vector<8x1xi1> to vector<8x1xi1>
    %244 = vector.broadcast %243 : vector<8x1xi1> to vector<8x32xi1>
    %245 = arith.select %244, %223, %184 : vector<8x32xi1>, vector<8x32xf32>
    %246 = vector.shape_cast %240 : vector<8x1xi1> to vector<8x1xi1>
    %247 = vector.broadcast %246 : vector<8x1xi1> to vector<8x32xi1>
    %248 = arith.select %247, %221, %187 : vector<8x32xi1>, vector<8x32xf32>
    %249 = vector.shape_cast %242 : vector<8x1xi1> to vector<8x1xi1>
    %250 = vector.broadcast %249 : vector<8x1xi1> to vector<8x32xi1>
    %251 = arith.select %250, %238, %190 : vector<8x32xi1>, vector<8x32xf32>
    %252 = vector.shape_cast %242 : vector<8x1xi1> to vector<8x1xi1>
    %253 = vector.broadcast %252 : vector<8x1xi1> to vector<8x32xi1>
    %254 = arith.select %253, %236, %193 : vector<8x32xi1>, vector<8x32xf32>
    %c4_i32 = arith.constant 4 : i32
    %c7_i32_48 = arith.constant 7 : i32
    %255 = arith.subi %c7_i32_48, %c4_i32 : i32
    %c8_i32_49 = arith.constant 8 : i32
    %256 = arith.muli %c4_i32, %c8_i32_49 : i32
    %257 = tpu.assume_multiple %256, 8 : i32
    %c8_i32_50 = arith.constant 8 : i32
    %258 = arith.muli %255, %c8_i32_50 : i32
    %259 = tpu.assume_multiple %258, 8 : i32
    %260 = arith.index_cast %257 : i32 to index
    %c0_51 = arith.constant 0 : index
    %261 = vector.load %arg9[%260, %c0_51] : memref<64x256xf32, #tpu.memory_space<vmem>>, vector<8x256xf32>
    %262 = arith.index_cast %259 : i32 to index
    %c0_52 = arith.constant 0 : index
    %263 = vector.load %arg9[%262, %c0_52] : memref<64x256xf32, #tpu.memory_space<vmem>>, vector<8x256xf32>
    %264 = vector.extract_strided_slice %261 {offsets = [0, 0], sizes = [8, 128], strides = [1, 1]} : vector<8x256xf32> to vector<8x128xf32>
    %cst_53 = arith.constant dense<0.000000e+00> : vector<8x128xf32>
    %265 = tpu.matmul %245, %8, %cst_53 {dimension_numbers = #tpu.dot_dimension_numbers<[1], [0], [0], [1], [0, 0, 1, 1], [], []>} : vector<8x32xf32>, vector<32x128xf32>, vector<8x128xf32> -> vector<8x128xf32>
    %266 = arith.addf %264, %265 : vector<8x128xf32>
    %267 = vector.extract_strided_slice %263 {offsets = [0, 128], sizes = [8, 128], strides = [1, 1]} : vector<8x256xf32> to vector<8x128xf32>
    %cst_54 = arith.constant dense<0.000000e+00> : vector<8x128xf32>
    %268 = tpu.matmul %251, %9, %cst_54 {dimension_numbers = #tpu.dot_dimension_numbers<[1], [0], [0], [1], [0, 0, 1, 1], [], []>} : vector<8x32xf32>, vector<32x128xf32>, vector<8x128xf32> -> vector<8x128xf32>
    %269 = arith.addf %267, %268 : vector<8x128xf32>
    %270 = arith.negf %266 : vector<8x128xf32>
    %271 = math.exp %270 : vector<8x128xf32>
    %cst_55 = arith.constant 1.000000e+00 : f32
    %272 = vector.broadcast %cst_55 : f32 to vector<8x128xf32>
    %273 = arith.addf %272, %271 : vector<8x128xf32>
    %274 = arith.divf %272, %273 : vector<8x128xf32>
    %275 = math.tanh %266 : vector<8x128xf32>
    %276 = vector.extract_strided_slice %274 {offsets = [0, 0], sizes = [8, 32], strides = [1, 1]} : vector<8x128xf32> to vector<8x32xf32>
    %277 = vector.extract_strided_slice %274 {offsets = [0, 32], sizes = [8, 32], strides = [1, 1]} : vector<8x128xf32> to vector<8x32xf32>
    %278 = vector.extract_strided_slice %275 {offsets = [0, 64], sizes = [8, 32], strides = [1, 1]} : vector<8x128xf32> to vector<8x32xf32>
    %279 = vector.extract_strided_slice %274 {offsets = [0, 96], sizes = [8, 32], strides = [1, 1]} : vector<8x128xf32> to vector<8x32xf32>
    %280 = arith.mulf %277, %248 : vector<8x32xf32>
    %281 = arith.mulf %276, %278 : vector<8x32xf32>
    %282 = arith.addf %280, %281 : vector<8x32xf32>
    %283 = math.tanh %282 : vector<8x32xf32>
    %284 = arith.mulf %279, %283 : vector<8x32xf32>
    %285 = arith.negf %269 : vector<8x128xf32>
    %286 = math.exp %285 : vector<8x128xf32>
    %cst_56 = arith.constant 1.000000e+00 : f32
    %287 = vector.broadcast %cst_56 : f32 to vector<8x128xf32>
    %288 = arith.addf %287, %286 : vector<8x128xf32>
    %289 = arith.divf %287, %288 : vector<8x128xf32>
    %290 = math.tanh %269 : vector<8x128xf32>
    %291 = vector.extract_strided_slice %289 {offsets = [0, 0], sizes = [8, 32], strides = [1, 1]} : vector<8x128xf32> to vector<8x32xf32>
    %292 = vector.extract_strided_slice %289 {offsets = [0, 32], sizes = [8, 32], strides = [1, 1]} : vector<8x128xf32> to vector<8x32xf32>
    %293 = vector.extract_strided_slice %290 {offsets = [0, 64], sizes = [8, 32], strides = [1, 1]} : vector<8x128xf32> to vector<8x32xf32>
    %294 = vector.extract_strided_slice %289 {offsets = [0, 96], sizes = [8, 32], strides = [1, 1]} : vector<8x128xf32> to vector<8x32xf32>
    %295 = arith.mulf %292, %254 : vector<8x32xf32>
    %296 = arith.mulf %291, %293 : vector<8x32xf32>
    %297 = arith.addf %295, %296 : vector<8x32xf32>
    %298 = math.tanh %297 : vector<8x32xf32>
    %299 = arith.mulf %294, %298 : vector<8x32xf32>
    %300 = vector.broadcast %c4_i32 : i32 to vector<8x1xi32>
    %301 = arith.cmpi slt, %300, %7 : vector<8x1xi32>
    %302 = vector.broadcast %255 : i32 to vector<8x1xi32>
    %303 = arith.cmpi slt, %302, %7 : vector<8x1xi32>
    %304 = vector.shape_cast %301 : vector<8x1xi1> to vector<8x1xi1>
    %305 = vector.broadcast %304 : vector<8x1xi1> to vector<8x32xi1>
    %306 = arith.select %305, %284, %245 : vector<8x32xi1>, vector<8x32xf32>
    %307 = vector.shape_cast %301 : vector<8x1xi1> to vector<8x1xi1>
    %308 = vector.broadcast %307 : vector<8x1xi1> to vector<8x32xi1>
    %309 = arith.select %308, %282, %248 : vector<8x32xi1>, vector<8x32xf32>
    %310 = vector.shape_cast %303 : vector<8x1xi1> to vector<8x1xi1>
    %311 = vector.broadcast %310 : vector<8x1xi1> to vector<8x32xi1>
    %312 = arith.select %311, %299, %251 : vector<8x32xi1>, vector<8x32xf32>
    %313 = vector.shape_cast %303 : vector<8x1xi1> to vector<8x1xi1>
    %314 = vector.broadcast %313 : vector<8x1xi1> to vector<8x32xi1>
    %315 = arith.select %314, %297, %254 : vector<8x32xi1>, vector<8x32xf32>
    %c5_i32 = arith.constant 5 : i32
    %c7_i32_57 = arith.constant 7 : i32
    %316 = arith.subi %c7_i32_57, %c5_i32 : i32
    %c8_i32_58 = arith.constant 8 : i32
    %317 = arith.muli %c5_i32, %c8_i32_58 : i32
    %318 = tpu.assume_multiple %317, 8 : i32
    %c8_i32_59 = arith.constant 8 : i32
    %319 = arith.muli %316, %c8_i32_59 : i32
    %320 = tpu.assume_multiple %319, 8 : i32
    %321 = arith.index_cast %318 : i32 to index
    %c0_60 = arith.constant 0 : index
    %322 = vector.load %arg9[%321, %c0_60] : memref<64x256xf32, #tpu.memory_space<vmem>>, vector<8x256xf32>
    %323 = arith.index_cast %320 : i32 to index
    %c0_61 = arith.constant 0 : index
    %324 = vector.load %arg9[%323, %c0_61] : memref<64x256xf32, #tpu.memory_space<vmem>>, vector<8x256xf32>
    %325 = vector.extract_strided_slice %322 {offsets = [0, 0], sizes = [8, 128], strides = [1, 1]} : vector<8x256xf32> to vector<8x128xf32>
    %cst_62 = arith.constant dense<0.000000e+00> : vector<8x128xf32>
    %326 = tpu.matmul %306, %8, %cst_62 {dimension_numbers = #tpu.dot_dimension_numbers<[1], [0], [0], [1], [0, 0, 1, 1], [], []>} : vector<8x32xf32>, vector<32x128xf32>, vector<8x128xf32> -> vector<8x128xf32>
    %327 = arith.addf %325, %326 : vector<8x128xf32>
    %328 = vector.extract_strided_slice %324 {offsets = [0, 128], sizes = [8, 128], strides = [1, 1]} : vector<8x256xf32> to vector<8x128xf32>
    %cst_63 = arith.constant dense<0.000000e+00> : vector<8x128xf32>
    %329 = tpu.matmul %312, %9, %cst_63 {dimension_numbers = #tpu.dot_dimension_numbers<[1], [0], [0], [1], [0, 0, 1, 1], [], []>} : vector<8x32xf32>, vector<32x128xf32>, vector<8x128xf32> -> vector<8x128xf32>
    %330 = arith.addf %328, %329 : vector<8x128xf32>
    %331 = arith.negf %327 : vector<8x128xf32>
    %332 = math.exp %331 : vector<8x128xf32>
    %cst_64 = arith.constant 1.000000e+00 : f32
    %333 = vector.broadcast %cst_64 : f32 to vector<8x128xf32>
    %334 = arith.addf %333, %332 : vector<8x128xf32>
    %335 = arith.divf %333, %334 : vector<8x128xf32>
    %336 = math.tanh %327 : vector<8x128xf32>
    %337 = vector.extract_strided_slice %335 {offsets = [0, 0], sizes = [8, 32], strides = [1, 1]} : vector<8x128xf32> to vector<8x32xf32>
    %338 = vector.extract_strided_slice %335 {offsets = [0, 32], sizes = [8, 32], strides = [1, 1]} : vector<8x128xf32> to vector<8x32xf32>
    %339 = vector.extract_strided_slice %336 {offsets = [0, 64], sizes = [8, 32], strides = [1, 1]} : vector<8x128xf32> to vector<8x32xf32>
    %340 = vector.extract_strided_slice %335 {offsets = [0, 96], sizes = [8, 32], strides = [1, 1]} : vector<8x128xf32> to vector<8x32xf32>
    %341 = arith.mulf %338, %309 : vector<8x32xf32>
    %342 = arith.mulf %337, %339 : vector<8x32xf32>
    %343 = arith.addf %341, %342 : vector<8x32xf32>
    %344 = math.tanh %343 : vector<8x32xf32>
    %345 = arith.mulf %340, %344 : vector<8x32xf32>
    %346 = arith.negf %330 : vector<8x128xf32>
    %347 = math.exp %346 : vector<8x128xf32>
    %cst_65 = arith.constant 1.000000e+00 : f32
    %348 = vector.broadcast %cst_65 : f32 to vector<8x128xf32>
    %349 = arith.addf %348, %347 : vector<8x128xf32>
    %350 = arith.divf %348, %349 : vector<8x128xf32>
    %351 = math.tanh %330 : vector<8x128xf32>
    %352 = vector.extract_strided_slice %350 {offsets = [0, 0], sizes = [8, 32], strides = [1, 1]} : vector<8x128xf32> to vector<8x32xf32>
    %353 = vector.extract_strided_slice %350 {offsets = [0, 32], sizes = [8, 32], strides = [1, 1]} : vector<8x128xf32> to vector<8x32xf32>
    %354 = vector.extract_strided_slice %351 {offsets = [0, 64], sizes = [8, 32], strides = [1, 1]} : vector<8x128xf32> to vector<8x32xf32>
    %355 = vector.extract_strided_slice %350 {offsets = [0, 96], sizes = [8, 32], strides = [1, 1]} : vector<8x128xf32> to vector<8x32xf32>
    %356 = arith.mulf %353, %315 : vector<8x32xf32>
    %357 = arith.mulf %352, %354 : vector<8x32xf32>
    %358 = arith.addf %356, %357 : vector<8x32xf32>
    %359 = math.tanh %358 : vector<8x32xf32>
    %360 = arith.mulf %355, %359 : vector<8x32xf32>
    %361 = vector.broadcast %c5_i32 : i32 to vector<8x1xi32>
    %362 = arith.cmpi slt, %361, %7 : vector<8x1xi32>
    %363 = vector.broadcast %316 : i32 to vector<8x1xi32>
    %364 = arith.cmpi slt, %363, %7 : vector<8x1xi32>
    %365 = vector.shape_cast %362 : vector<8x1xi1> to vector<8x1xi1>
    %366 = vector.broadcast %365 : vector<8x1xi1> to vector<8x32xi1>
    %367 = arith.select %366, %345, %306 : vector<8x32xi1>, vector<8x32xf32>
    %368 = vector.shape_cast %362 : vector<8x1xi1> to vector<8x1xi1>
    %369 = vector.broadcast %368 : vector<8x1xi1> to vector<8x32xi1>
    %370 = arith.select %369, %343, %309 : vector<8x32xi1>, vector<8x32xf32>
    %371 = vector.shape_cast %364 : vector<8x1xi1> to vector<8x1xi1>
    %372 = vector.broadcast %371 : vector<8x1xi1> to vector<8x32xi1>
    %373 = arith.select %372, %360, %312 : vector<8x32xi1>, vector<8x32xf32>
    %374 = vector.shape_cast %364 : vector<8x1xi1> to vector<8x1xi1>
    %375 = vector.broadcast %374 : vector<8x1xi1> to vector<8x32xi1>
    %376 = arith.select %375, %358, %315 : vector<8x32xi1>, vector<8x32xf32>
    %c6_i32 = arith.constant 6 : i32
    %c7_i32_66 = arith.constant 7 : i32
    %377 = arith.subi %c7_i32_66, %c6_i32 : i32
    %c8_i32_67 = arith.constant 8 : i32
    %378 = arith.muli %c6_i32, %c8_i32_67 : i32
    %379 = tpu.assume_multiple %378, 8 : i32
    %c8_i32_68 = arith.constant 8 : i32
    %380 = arith.muli %377, %c8_i32_68 : i32
    %381 = tpu.assume_multiple %380, 8 : i32
    %382 = arith.index_cast %379 : i32 to index
    %c0_69 = arith.constant 0 : index
    %383 = vector.load %arg9[%382, %c0_69] : memref<64x256xf32, #tpu.memory_space<vmem>>, vector<8x256xf32>
    %384 = arith.index_cast %381 : i32 to index
    %c0_70 = arith.constant 0 : index
    %385 = vector.load %arg9[%384, %c0_70] : memref<64x256xf32, #tpu.memory_space<vmem>>, vector<8x256xf32>
    %386 = vector.extract_strided_slice %383 {offsets = [0, 0], sizes = [8, 128], strides = [1, 1]} : vector<8x256xf32> to vector<8x128xf32>
    %cst_71 = arith.constant dense<0.000000e+00> : vector<8x128xf32>
    %387 = tpu.matmul %367, %8, %cst_71 {dimension_numbers = #tpu.dot_dimension_numbers<[1], [0], [0], [1], [0, 0, 1, 1], [], []>} : vector<8x32xf32>, vector<32x128xf32>, vector<8x128xf32> -> vector<8x128xf32>
    %388 = arith.addf %386, %387 : vector<8x128xf32>
    %389 = vector.extract_strided_slice %385 {offsets = [0, 128], sizes = [8, 128], strides = [1, 1]} : vector<8x256xf32> to vector<8x128xf32>
    %cst_72 = arith.constant dense<0.000000e+00> : vector<8x128xf32>
    %390 = tpu.matmul %373, %9, %cst_72 {dimension_numbers = #tpu.dot_dimension_numbers<[1], [0], [0], [1], [0, 0, 1, 1], [], []>} : vector<8x32xf32>, vector<32x128xf32>, vector<8x128xf32> -> vector<8x128xf32>
    %391 = arith.addf %389, %390 : vector<8x128xf32>
    %392 = arith.negf %388 : vector<8x128xf32>
    %393 = math.exp %392 : vector<8x128xf32>
    %cst_73 = arith.constant 1.000000e+00 : f32
    %394 = vector.broadcast %cst_73 : f32 to vector<8x128xf32>
    %395 = arith.addf %394, %393 : vector<8x128xf32>
    %396 = arith.divf %394, %395 : vector<8x128xf32>
    %397 = math.tanh %388 : vector<8x128xf32>
    %398 = vector.extract_strided_slice %396 {offsets = [0, 0], sizes = [8, 32], strides = [1, 1]} : vector<8x128xf32> to vector<8x32xf32>
    %399 = vector.extract_strided_slice %396 {offsets = [0, 32], sizes = [8, 32], strides = [1, 1]} : vector<8x128xf32> to vector<8x32xf32>
    %400 = vector.extract_strided_slice %397 {offsets = [0, 64], sizes = [8, 32], strides = [1, 1]} : vector<8x128xf32> to vector<8x32xf32>
    %401 = vector.extract_strided_slice %396 {offsets = [0, 96], sizes = [8, 32], strides = [1, 1]} : vector<8x128xf32> to vector<8x32xf32>
    %402 = arith.mulf %399, %370 : vector<8x32xf32>
    %403 = arith.mulf %398, %400 : vector<8x32xf32>
    %404 = arith.addf %402, %403 : vector<8x32xf32>
    %405 = math.tanh %404 : vector<8x32xf32>
    %406 = arith.mulf %401, %405 : vector<8x32xf32>
    %407 = arith.negf %391 : vector<8x128xf32>
    %408 = math.exp %407 : vector<8x128xf32>
    %cst_74 = arith.constant 1.000000e+00 : f32
    %409 = vector.broadcast %cst_74 : f32 to vector<8x128xf32>
    %410 = arith.addf %409, %408 : vector<8x128xf32>
    %411 = arith.divf %409, %410 : vector<8x128xf32>
    %412 = math.tanh %391 : vector<8x128xf32>
    %413 = vector.extract_strided_slice %411 {offsets = [0, 0], sizes = [8, 32], strides = [1, 1]} : vector<8x128xf32> to vector<8x32xf32>
    %414 = vector.extract_strided_slice %411 {offsets = [0, 32], sizes = [8, 32], strides = [1, 1]} : vector<8x128xf32> to vector<8x32xf32>
    %415 = vector.extract_strided_slice %412 {offsets = [0, 64], sizes = [8, 32], strides = [1, 1]} : vector<8x128xf32> to vector<8x32xf32>
    %416 = vector.extract_strided_slice %411 {offsets = [0, 96], sizes = [8, 32], strides = [1, 1]} : vector<8x128xf32> to vector<8x32xf32>
    %417 = arith.mulf %414, %376 : vector<8x32xf32>
    %418 = arith.mulf %413, %415 : vector<8x32xf32>
    %419 = arith.addf %417, %418 : vector<8x32xf32>
    %420 = math.tanh %419 : vector<8x32xf32>
    %421 = arith.mulf %416, %420 : vector<8x32xf32>
    %422 = vector.broadcast %c6_i32 : i32 to vector<8x1xi32>
    %423 = arith.cmpi slt, %422, %7 : vector<8x1xi32>
    %424 = vector.broadcast %377 : i32 to vector<8x1xi32>
    %425 = arith.cmpi slt, %424, %7 : vector<8x1xi32>
    %426 = vector.shape_cast %423 : vector<8x1xi1> to vector<8x1xi1>
    %427 = vector.broadcast %426 : vector<8x1xi1> to vector<8x32xi1>
    %428 = arith.select %427, %406, %367 : vector<8x32xi1>, vector<8x32xf32>
    %429 = vector.shape_cast %423 : vector<8x1xi1> to vector<8x1xi1>
    %430 = vector.broadcast %429 : vector<8x1xi1> to vector<8x32xi1>
    %431 = arith.select %430, %404, %370 : vector<8x32xi1>, vector<8x32xf32>
    %432 = vector.shape_cast %425 : vector<8x1xi1> to vector<8x1xi1>
    %433 = vector.broadcast %432 : vector<8x1xi1> to vector<8x32xi1>
    %434 = arith.select %433, %421, %373 : vector<8x32xi1>, vector<8x32xf32>
    %435 = vector.shape_cast %425 : vector<8x1xi1> to vector<8x1xi1>
    %436 = vector.broadcast %435 : vector<8x1xi1> to vector<8x32xi1>
    %437 = arith.select %436, %419, %376 : vector<8x32xi1>, vector<8x32xf32>
    %c7_i32_75 = arith.constant 7 : i32
    %c7_i32_76 = arith.constant 7 : i32
    %438 = arith.subi %c7_i32_76, %c7_i32_75 : i32
    %c8_i32_77 = arith.constant 8 : i32
    %439 = arith.muli %c7_i32_75, %c8_i32_77 : i32
    %440 = tpu.assume_multiple %439, 8 : i32
    %c8_i32_78 = arith.constant 8 : i32
    %441 = arith.muli %438, %c8_i32_78 : i32
    %442 = tpu.assume_multiple %441, 8 : i32
    %443 = arith.index_cast %440 : i32 to index
    %c0_79 = arith.constant 0 : index
    %444 = vector.load %arg9[%443, %c0_79] : memref<64x256xf32, #tpu.memory_space<vmem>>, vector<8x256xf32>
    %445 = arith.index_cast %442 : i32 to index
    %c0_80 = arith.constant 0 : index
    %446 = vector.load %arg9[%445, %c0_80] : memref<64x256xf32, #tpu.memory_space<vmem>>, vector<8x256xf32>
    %447 = vector.extract_strided_slice %444 {offsets = [0, 0], sizes = [8, 128], strides = [1, 1]} : vector<8x256xf32> to vector<8x128xf32>
    %cst_81 = arith.constant dense<0.000000e+00> : vector<8x128xf32>
    %448 = tpu.matmul %428, %8, %cst_81 {dimension_numbers = #tpu.dot_dimension_numbers<[1], [0], [0], [1], [0, 0, 1, 1], [], []>} : vector<8x32xf32>, vector<32x128xf32>, vector<8x128xf32> -> vector<8x128xf32>
    %449 = arith.addf %447, %448 : vector<8x128xf32>
    %450 = vector.extract_strided_slice %446 {offsets = [0, 128], sizes = [8, 128], strides = [1, 1]} : vector<8x256xf32> to vector<8x128xf32>
    %cst_82 = arith.constant dense<0.000000e+00> : vector<8x128xf32>
    %451 = tpu.matmul %434, %9, %cst_82 {dimension_numbers = #tpu.dot_dimension_numbers<[1], [0], [0], [1], [0, 0, 1, 1], [], []>} : vector<8x32xf32>, vector<32x128xf32>, vector<8x128xf32> -> vector<8x128xf32>
    %452 = arith.addf %450, %451 : vector<8x128xf32>
    %453 = arith.negf %449 : vector<8x128xf32>
    %454 = math.exp %453 : vector<8x128xf32>
    %cst_83 = arith.constant 1.000000e+00 : f32
    %455 = vector.broadcast %cst_83 : f32 to vector<8x128xf32>
    %456 = arith.addf %455, %454 : vector<8x128xf32>
    %457 = arith.divf %455, %456 : vector<8x128xf32>
    %458 = math.tanh %449 : vector<8x128xf32>
    %459 = vector.extract_strided_slice %457 {offsets = [0, 0], sizes = [8, 32], strides = [1, 1]} : vector<8x128xf32> to vector<8x32xf32>
    %460 = vector.extract_strided_slice %457 {offsets = [0, 32], sizes = [8, 32], strides = [1, 1]} : vector<8x128xf32> to vector<8x32xf32>
    %461 = vector.extract_strided_slice %458 {offsets = [0, 64], sizes = [8, 32], strides = [1, 1]} : vector<8x128xf32> to vector<8x32xf32>
    %462 = vector.extract_strided_slice %457 {offsets = [0, 96], sizes = [8, 32], strides = [1, 1]} : vector<8x128xf32> to vector<8x32xf32>
    %463 = arith.mulf %460, %431 : vector<8x32xf32>
    %464 = arith.mulf %459, %461 : vector<8x32xf32>
    %465 = arith.addf %463, %464 : vector<8x32xf32>
    %466 = math.tanh %465 : vector<8x32xf32>
    %467 = arith.mulf %462, %466 : vector<8x32xf32>
    %468 = arith.negf %452 : vector<8x128xf32>
    %469 = math.exp %468 : vector<8x128xf32>
    %cst_84 = arith.constant 1.000000e+00 : f32
    %470 = vector.broadcast %cst_84 : f32 to vector<8x128xf32>
    %471 = arith.addf %470, %469 : vector<8x128xf32>
    %472 = arith.divf %470, %471 : vector<8x128xf32>
    %473 = math.tanh %452 : vector<8x128xf32>
    %474 = vector.extract_strided_slice %472 {offsets = [0, 0], sizes = [8, 32], strides = [1, 1]} : vector<8x128xf32> to vector<8x32xf32>
    %475 = vector.extract_strided_slice %472 {offsets = [0, 32], sizes = [8, 32], strides = [1, 1]} : vector<8x128xf32> to vector<8x32xf32>
    %476 = vector.extract_strided_slice %473 {offsets = [0, 64], sizes = [8, 32], strides = [1, 1]} : vector<8x128xf32> to vector<8x32xf32>
    %477 = vector.extract_strided_slice %472 {offsets = [0, 96], sizes = [8, 32], strides = [1, 1]} : vector<8x128xf32> to vector<8x32xf32>
    %478 = arith.mulf %475, %437 : vector<8x32xf32>
    %479 = arith.mulf %474, %476 : vector<8x32xf32>
    %480 = arith.addf %478, %479 : vector<8x32xf32>
    %481 = math.tanh %480 : vector<8x32xf32>
    %482 = arith.mulf %477, %481 : vector<8x32xf32>
    %483 = vector.broadcast %c7_i32_75 : i32 to vector<8x1xi32>
    %484 = arith.cmpi slt, %483, %7 : vector<8x1xi32>
    %485 = vector.broadcast %438 : i32 to vector<8x1xi32>
    %486 = arith.cmpi slt, %485, %7 : vector<8x1xi32>
    %487 = vector.shape_cast %484 : vector<8x1xi1> to vector<8x1xi1>
    %488 = vector.broadcast %487 : vector<8x1xi1> to vector<8x32xi1>
    %489 = arith.select %488, %467, %428 : vector<8x32xi1>, vector<8x32xf32>
    %490 = vector.shape_cast %484 : vector<8x1xi1> to vector<8x1xi1>
    %491 = vector.broadcast %490 : vector<8x1xi1> to vector<8x32xi1>
    %492 = arith.select %491, %465, %431 : vector<8x32xi1>, vector<8x32xf32>
    %493 = vector.shape_cast %486 : vector<8x1xi1> to vector<8x1xi1>
    %494 = vector.broadcast %493 : vector<8x1xi1> to vector<8x32xi1>
    %495 = arith.select %494, %482, %434 : vector<8x32xi1>, vector<8x32xf32>
    %496 = vector.shape_cast %486 : vector<8x1xi1> to vector<8x1xi1>
    %497 = vector.broadcast %496 : vector<8x1xi1> to vector<8x32xi1>
    %498 = arith.select %497, %480, %437 : vector<8x32xi1>, vector<8x32xf32>
    %c8_i32_85 = arith.constant 8 : i32
    %c0_86 = arith.constant 0 : index
    %c0_87 = arith.constant 0 : index
    %499 = vector.load %arg6[%c0_86, %c0_87] : memref<32x32xf32, #tpu.memory_space<vmem>>, vector<32x32xf32>
    %cst_88 = arith.constant dense<0.000000e+00> : vector<8x32xf32>
    %500 = tpu.matmul %489, %499, %cst_88 {dimension_numbers = #tpu.dot_dimension_numbers<[1], [0], [0], [1], [0, 0, 1, 1], [], []>} : vector<8x32xf32>, vector<32x32xf32>, vector<8x32xf32> -> vector<8x32xf32>
    %c0_89 = arith.constant 0 : index
    %c0_90 = arith.constant 0 : index
    %501 = vector.load %arg7[%c0_89, %c0_90] : memref<32x32xf32, #tpu.memory_space<vmem>>, vector<32x32xf32>
    %cst_91 = arith.constant dense<0.000000e+00> : vector<8x32xf32>
    %502 = tpu.matmul %495, %501, %cst_91 {dimension_numbers = #tpu.dot_dimension_numbers<[1], [0], [0], [1], [0, 0, 1, 1], [], []>} : vector<8x32xf32>, vector<32x32xf32>, vector<8x32xf32> -> vector<8x32xf32>
    %503 = arith.addf %500, %502 : vector<8x32xf32>
    %c0_92 = arith.constant 0 : index
    %c0_93 = arith.constant 0 : index
    %504 = vector.load %arg8[%c0_92, %c0_93] : memref<8x32xf32, #tpu.memory_space<vmem>>, vector<8x32xf32>
    tpu.vector_store %arg8[%c0_92, %c0_93], %503 {strides = array<i32>} : memref<8x32xf32, #tpu.memory_space<vmem>>, vector<8x32xf32>,
    return
  }
}

</mosaic_0001>

<llo_original>
// kernel: tpu_custom_call.1
$region0: #{tpu_custom_call.1}
  #allocation0 [shape = 'u32[]', space=smem, size = 0x4, offset = 0x4, fixed_abs, tag = 'smem constant byte address 0x4 - core index']
  #allocation1 [shape = 'u32[144,128]{1,0:T(1,128)}', space=vmem, size = 0x12000, scoped, tag = 'internal scratch']
  #allocation2 [shape = 'f32[64,256]{1,0:T(8,128)}', space=vmem, size = 0x10000, scoped, tag = 'scratch operand']
  %s0 = inlined_call_operand.vmem [shape: f32[64,16], index: 0, kind: input, shape index: {}]
  %s1 = inlined_call_operand.vmem [shape: s32[8,1], index: 1, kind: input, shape index: {}]
  %s2 = inlined_call_operand.vmem [shape: f32[16,256], index: 2, kind: input, shape index: {}]
  %s3 = inlined_call_operand.vmem [shape: f32[1,256], index: 3, kind: input, shape index: {}]
  %s4 = inlined_call_operand.vmem [shape: f32[32,128], index: 4, kind: input, shape index: {}]
  %s5 = inlined_call_operand.vmem [shape: f32[32,128], index: 5, kind: input, shape index: {}]
  %s6 = inlined_call_operand.hbm [shape: f32[32,32], index: 6, kind: input, shape index: {}]
  %s7 = inlined_call_operand.hbm [shape: f32[32,32], index: 7, kind: input, shape index: {}]
  %s8 = inlined_call_operand.hbm [shape: f32[8,32], index: 8, kind: output, shape index: {}]
  %s9 = sld [smem:[#allocation0]]
  $region50: #{tpu_custom_call.1} parent=0
    _
  %s11 = ssub.s32 1, %s9
  %s12 = scalar_select 0, %s11, %s9
  $region1: #{tpu_custom_call.1} parent=0
    #allocation3 [shape = 'u8[16384]{0}', space=vmem, size = 0x4000, scoped, tag = 'input window, operand 6, single buffered']
    #allocation4 [shape = 's32[1]{0}', space=sflag, size = 0x4, scoped, tag = 'scoped memory for tpu_custom_call.1']
    #allocation5 [shape = 's32[1]{0}', space=sflag, size = 0x4, scoped, tag = 'scoped memory for tpu_custom_call.1']
    #allocation6 [shape = 'u8[16384]{0}', space=vmem, size = 0x4000, scoped, tag = 'input window, operand 7, single buffered']
    #allocation7 [shape = 's32[1]{0}', space=sflag, size = 0x4, scoped, tag = 'scoped memory for tpu_custom_call.1']
    #allocation8 [shape = 'u8[4096]{0}', space=vmem, size = 0x1000, scoped, tag = 'output window, operand 0, single buffered']
    %13 = vsyncpa [#allocation4], 0
    %14 = vsyncpa [#allocation7], 0
    %15 = vsyncpa [#allocation5], 0
    // Predicated region
    $region2: #{tpu_custom_call.1} parent=1 // pred_check
      _
    $region3: #{tpu_custom_call.1} parent=1 // pred_check_branch
      %17 = sbr.rel (0) target = $region5
    $region4: #{tpu_custom_call.1} parent=1 // pred_region
      _
    $region5: #{tpu_custom_call.1} parent=1 // pred_fallthru
      _
    // Predicated region
    $region6: #{tpu_custom_call.1} parent=1 // pred_check
      _
    $region7: #{tpu_custom_call.1} parent=1 // pred_check_branch
      %19 = sbr.rel (0) target = $region9
    $region8: #{tpu_custom_call.1} parent=1 // pred_region
      _
    $region9: #{tpu_custom_call.1} parent=1 // pred_fallthru
      _
    // Predicated region
    $region10: #{tpu_custom_call.1} parent=1 // pred_check
      _
    $region11: #{tpu_custom_call.1} parent=1 // pred_check_branch
      %21 = sbr.rel (0) target = $region13
    $region12: #{tpu_custom_call.1} parent=1 // pred_region
      _
    $region13: #{tpu_custom_call.1} parent=1 // pred_fallthru
      _
    // Predicated region
    $region14: #{tpu_custom_call.1} parent=1 // pred_check
      _
    $region15: #{tpu_custom_call.1} parent=1 // pred_check_branch
      %23 = sbr.rel (0) target = $region17
    $region16: #{tpu_custom_call.1} parent=1 // pred_region
      _
    $region17: #{tpu_custom_call.1} parent=1 // pred_fallthru
      _
    // Predicated region
    $region18: #{tpu_custom_call.1} parent=1 // pred_check
      _
    $region19: #{tpu_custom_call.1} parent=1 // pred_check_branch
      %25 = sbr.rel (0) target = $region21
    $region20: #{tpu_custom_call.1} parent=1 // pred_region
      _
    $region21: #{tpu_custom_call.1} parent=1 // pred_fallthru
      _
    // Predicated region
    $region22: #{tpu_custom_call.1} parent=1 // pred_check
      _
    $region23: #{tpu_custom_call.1} parent=1 // pred_check_branch
      %27 = sbr.rel (0) target = $region25
    $region24: #{tpu_custom_call.1} parent=1 // pred_region
      _
    $region25: #{tpu_custom_call.1} parent=1 // pred_fallthru
      _
    // Predicated region
    $region26: #{tpu_custom_call.1} parent=1 // pred_check
      _
    $region27: #{tpu_custom_call.1} parent=1 // pred_check_branch
      %29 = sbr.rel (0) target = $region29
    $region28: #{tpu_custom_call.1} parent=1 // pred_region
      %s31 = ssub.s32 512, 512
      %32 = vsyncadd [#allocation4], %s31
      %s33 = sshll.u32 [#allocation3], 4
      %s34 = int_to_ptr.vmem [resolvable:$true] %s33
      %39 = dma.hbm_to_vmem [thread:$0]  %s6, 512, %s34, [#allocation4], 128, 128, 8
    $region29: #{tpu_custom_call.1} parent=1 // pred_fallthru
      _
    // Predicated region
    $region30: #{tpu_custom_call.1} parent=1 // pred_check
      _
    $region31: #{tpu_custom_call.1} parent=1 // pred_check_branch
      %41 = sbr.rel (0) target = $region33
    $region32: #{tpu_custom_call.1} parent=1 // pred_region
      %s43 = ssub.s32 512, 512
      %44 = vsyncadd [#allocation7], %s43
      %s45 = sshll.u32 [#allocation6], 4
      %s46 = int_to_ptr.vmem [resolvable:$true] %s45
      %51 = dma.hbm_to_vmem [thread:$0]  %s7, 512, %s46, [#allocation7], 128, 128, 8
    $region33: #{tpu_custom_call.1} parent=1 // pred_fallthru
      _
    // Predicated region
    $region34: #{tpu_custom_call.1} parent=1 // pred_check
      _
    $region35: #{tpu_custom_call.1} parent=1 // pred_check_branch
      %53 = sbr.rel (0) target = $region37
    $region36: #{tpu_custom_call.1} parent=1 // pred_region
      %54 = dma.done [#allocation4], 512
    $region37: #{tpu_custom_call.1} parent=1 // pred_fallthru
      _
    // Predicated region
    $region38: #{tpu_custom_call.1} parent=1 // pred_check
      _
    $region39: #{tpu_custom_call.1} parent=1 // pred_check_branch
      %56 = sbr.rel (0) target = $region41
    $region40: #{tpu_custom_call.1} parent=1 // pred_region
      %57 = dma.done [#allocation7], 512
    $region41: #{tpu_custom_call.1} parent=1 // pred_fallthru
      _
    %v58 = vld [vmem:[%s0] sm:$0xff]
    %v59 = vld [vmem:[%s0 + $0x8] sm:$0xff]
    %v60 = vld [vmem:[%s0 + $0x10] sm:$0xff]
    %v61 = vld [vmem:[%s0 + $0x18] sm:$0xff]
    %v62 = vld [vmem:[%s0 + $0x20] sm:$0xff]
    %v63 = vld [vmem:[%s0 + $0x28] sm:$0xff]
    %v64 = vld [vmem:[%s0 + $0x30] sm:$0xff]
    %v65 = vld [vmem:[%s0 + $0x38] sm:$0xff]
    %v66 = vld [vmem:[%s2] sm:$0xff]
    %v67 = vld [vmem:[%s2 + $0x8] sm:$0xff]
    %v68 = vld [vmem:[%s2 + $0x10] sm:$0xff]
    %v69 = vld [vmem:[%s2 + $0x18] sm:$0xff]
    %v70 = vld [vmem:[%s3] sm:$0x3]
    %v72 = vlaneseq
    %v73 = vshrl.u32 %v72, 7
    %v74 = vsub.s32 0, %v73
    %v75 = vrot.slane %v70, %v74
    %v76 = vlaneseq
    %v77 = vshrl.u32 %v76, 7
    %v78 = vsub.s32 1, %v77
    %v79 = vrot.slane %v70, %v78
    %vm82 = vcmask 130048
    %v84 = vsel %vm82, %v58, 0
    %v87 = vsel %vm82, %v59, 0
    %v90 = vsel %vm82, %v60, 0
    %v93 = vsel %vm82, %v61, 0
    %v96 = vsel %vm82, %v62, 0
    %v99 = vsel %vm82, %v63, 0
    %v102 = vsel %vm82, %v64, 0
    %v105 = vsel %vm82, %v65, 0
    %107 = vmatprep.subr.mxu0 %v67
    %108 = vmatpush1.msra.mxu0 %v66
    %109 = vmatprep.subr.mxu0 %v69
    %110 = vmatpush1.msra.mxu0 %v68
    %111 = vmatprep.subr.mxu0 0.0
    %112 = vmatpush1.msra.mxu0 0.0
    %113 = vmatprep.subr.mxu0 0.0
    %114 = vmatpush1.msra.mxu0 0.0
    %115 = vmatprep.subr.mxu0 0.0
    %116 = vmatpush1.msra.mxu0 0.0
    %117 = vmatprep.subr.mxu0 0.0
    %118 = vmatpush1.msra.mxu0 0.0
    %119 = vmatprep.subr.mxu0 0.0
    %120 = vmatpush1.msra.mxu0 0.0
    %121 = vmatprep.subr.mxu0 0.0
    %122 = vmatpush1.msra.mxu0 0.0
    %123 = vmatprep.subr.mxu0 0.0
    %124 = vmatpush1.msra.mxu0 0.0
    %125 = vmatprep.subr.mxu0 0.0
    %126 = vmatpush1.msra.mxu0 0.0
    %127 = vmatprep.subr.mxu0 0.0
    %128 = vmatpush1.msra.mxu0 0.0
    %129 = vmatprep.subr.mxu0 0.0
    %130 = vmatpush1.msra.mxu0 0.0
    %131 = vmatprep.subr.mxu0 0.0
    %132 = vmatpush1.msra.mxu0 0.0
    %133 = vmatprep.subr.mxu0 0.0
    %134 = vmatpush1.msra.mxu0 0.0
    %135 = vmatprep.subr.mxu0 0.0
    %136 = vmatpush1.msra.mxu0 0.0
    %137 = vmatprep.subr.mxu0 0.0
    %138 = vmatpush1.msra.mxu0 0.0
    %139 = vmatprep.subr.mxu0 0.0
    %140 = vmatpush1.msra.mxu0 0.0
    %141 = vmatprep.subr.mxu0 0.0
    %142 = vmatpush1.msra.mxu0 0.0
    %143 = vmatprep.subr.mxu0 0.0
    %144 = vmatpush1.msra.mxu0 0.0
    %145 = vmatprep.subr.mxu0 0.0
    %146 = vmatpush1.msra.mxu0 0.0
    %147 = vmatprep.subr.mxu0 0.0
    %148 = vmatpush1.msra.mxu0 0.0
    %149 = vmatprep.subr.mxu0 0.0
    %150 = vmatpush1.msra.mxu0 0.0
    %151 = vmatprep.subr.mxu0 0.0
    %152 = vmatpush1.msra.mxu0 0.0
    %153 = vmatprep.subr.mxu0 0.0
    %154 = vmatpush1.msra.mxu0 0.0
    %155 = vmatprep.subr.mxu0 0.0
    %156 = vmatpush1.msra.mxu0 0.0
    %157 = vmatprep.subr.mxu0 0.0
    %158 = vmatpush1.msra.mxu0 0.0
    %159 = vmatprep.subr.mxu0 0.0
    %160 = vmatpush1.msra.mxu0 0.0
    %161 = vmatprep.subr.mxu0 0.0
    %162 = vmatpush1.msra.mxu0 0.0
    %163 = vmatprep.subr.mxu0 0.0
    %164 = vmatpush1.msra.mxu0 0.0
    %165 = vmatprep.subr.mxu0 0.0
    %166 = vmatpush1.msra.mxu0 0.0
    %167 = vmatprep.subr.mxu0 0.0
    %168 = vmatpush1.msra.mxu0 0.0
    %169 = vmatprep.subr.mxu0 0.0
    %170 = vmatpush1.msra.mxu0 0.0
    %171 = vmatprep.mubr.f32.mxu0 0.0
    %172 = vmatmul.mubr.f32.gmra.mrb[0].mxu0 %v84
    %v173 = vpop.f32.mrb[0].mxu0
    %v174 = vadd.f32 %v75, %v173
    %v175 = vpop.f32.mrb[0].mxu0
    %v176 = vadd.f32 %v79, %v175
    %177 = vmatprep.mubr.f32.mxu0 0.0
    %178 = vmatmul.mubr.f32.gmra.mrb[0].mxu0 %v87
    %v179 = vpop.f32.mrb[0].mxu0
    %v180 = vadd.f32 %v75, %v179
    %v181 = vpop.f32.mrb[0].mxu0
    %v182 = vadd.f32 %v79, %v181
    %183 = vmatprep.mubr.f32.mxu0 0.0
    %184 = vmatmul.mubr.f32.gmra.mrb[0].mxu0 %v90
    %v185 = vpop.f32.mrb[0].mxu0
    %v186 = vadd.f32 %v75, %v185
    %v187 = vpop.f32.mrb[0].mxu0
    %v188 = vadd.f32 %v79, %v187
    %189 = vmatprep.mubr.f32.mxu0 0.0
    %190 = vmatmul.mubr.f32.gmra.mrb[0].mxu0 %v93
    %v191 = vpop.f32.mrb[0].mxu0
    %v192 = vadd.f32 %v75, %v191
    %v193 = vpop.f32.mrb[0].mxu0
    %v194 = vadd.f32 %v79, %v193
    %195 = vmatprep.mubr.f32.mxu0 0.0
    %196 = vmatmul.mubr.f32.gmra.mrb[0].mxu0 %v96
    %v197 = vpop.f32.mrb[0].mxu0
    %v198 = vadd.f32 %v75, %v197
    %v199 = vpop.f32.mrb[0].mxu0
    %v200 = vadd.f32 %v79, %v199
    %201 = vmatprep.mubr.f32.mxu0 0.0
    %202 = vmatmul.mubr.f32.gmra.mrb[0].mxu0 %v99
    %v203 = vpop.f32.mrb[0].mxu0
    %v204 = vadd.f32 %v75, %v203
    %v205 = vpop.f32.mrb[0].mxu0
    %v206 = vadd.f32 %v79, %v205
    %207 = vmatprep.mubr.f32.mxu0 0.0
    %208 = vmatmul.mubr.f32.gmra.mrb[0].mxu0 %v102
    %v209 = vpop.f32.mrb[0].mxu0
    %v210 = vadd.f32 %v75, %v209
    %v211 = vpop.f32.mrb[0].mxu0
    %v212 = vadd.f32 %v79, %v211
    %213 = vmatprep.mubr.f32.mxu0 0.0
    %214 = vmatmul.mubr.f32.gmra.mrb[0].mxu0 %v105
    %v215 = vpop.f32.mrb[0].mxu0
    %v216 = vadd.f32 %v75, %v215
    %v217 = vpop.f32.mrb[0].mxu0
    %v218 = vadd.f32 %v79, %v217
    %219 = vdwg.mxu0
    %220 = vst [vmem:[#allocation2] sm:$0xff] %v174
    %221 = vst [vmem:[#allocation2 + $0x8] sm:$0xff] %v176
    %222 = vst [vmem:[#allocation2 + $0x10] sm:$0xff] %v180
    %223 = vst [vmem:[#allocation2 + $0x18] sm:$0xff] %v182
    %224 = vst [vmem:[#allocation2 + $0x20] sm:$0xff] %v186
    %225 = vst [vmem:[#allocation2 + $0x28] sm:$0xff] %v188
    %226 = vst [vmem:[#allocation2 + $0x30] sm:$0xff] %v192
    %227 = vst [vmem:[#allocation2 + $0x38] sm:$0xff] %v194
    %228 = vst [vmem:[#allocation2 + $0x40] sm:$0xff] %v198
    %229 = vst [vmem:[#allocation2 + $0x48] sm:$0xff] %v200
    %230 = vst [vmem:[#allocation2 + $0x50] sm:$0xff] %v204
    %231 = vst [vmem:[#allocation2 + $0x58] sm:$0xff] %v206
    %232 = vst [vmem:[#allocation2 + $0x60] sm:$0xff] %v210
    %233 = vst [vmem:[#allocation2 + $0x68] sm:$0xff] %v212
    %234 = vst [vmem:[#allocation2 + $0x70] sm:$0xff] %v216
    %235 = vst [vmem:[#allocation2 + $0x78] sm:$0xff] %v218
    %v236 = vld [vmem:[%s1] sm:$0xff]
    %v237 = vld [vmem:[%s4] sm:$0xff]
    %v238 = vld [vmem:[%s4 + $0x8] sm:$0xff]
    %v239 = vld [vmem:[%s4 + $0x10] sm:$0xff]
    %v240 = vld [vmem:[%s4 + $0x18] sm:$0xff]
    %v241 = vld [vmem:[%s5] sm:$0xff]
    %v242 = vld [vmem:[%s5 + $0x8] sm:$0xff]
    %v243 = vld [vmem:[%s5 + $0x10] sm:$0xff]
    %v244 = vld [vmem:[%s5 + $0x18] sm:$0xff]
    %s245 = smul.u32 0, 2
    %s246 = smul.addr %s245, 8
    %s247 = scalar_lea.vmem [#allocation2], %s246
    %v248 = vld [vmem:[%s247] sm:$0xff]
    %v249 = vld [vmem:[%s247 + $0x8] sm:$0xff]
    %s250 = smul.u32 7, 2
    %s251 = smul.addr %s250, 8
    %s252 = scalar_lea.vmem [#allocation2], %s251
    %v253 = vld [vmem:[%s252] sm:$0xff]
    %v254 = vld [vmem:[%s252 + $0x8] sm:$0xff]
    %vm255 = vcmask 261120
    %v257 = vsel %vm255, 0.0, 0
    %259 = vmatprep.subr.mxu0 0.0
    %260 = vmatpush1.msra.mxu0 %v237
    %261 = vmatprep.subr.mxu0 0.0
    %262 = vmatpush1.msra.mxu0 %v238
    %263 = vmatprep.subr.mxu0 0.0
    %264 = vmatpush1.msra.mxu0 %v239
    %265 = vmatprep.subr.mxu0 0.0
    %266 = vmatpush1.msra.mxu0 %v240
    %267 = vmatprep.subr.mxu0 0.0
    %268 = vmatpush1.msra.mxu0 0.0
    %269 = vmatprep.subr.mxu0 0.0
    %270 = vmatpush1.msra.mxu0 0.0
    %271 = vmatprep.subr.mxu0 0.0
    %272 = vmatpush1.msra.mxu0 0.0
    %273 = vmatprep.subr.mxu0 0.0
    %274 = vmatpush1.msra.mxu0 0.0
    %275 = vmatprep.subr.mxu0 0.0
    %276 = vmatpush1.msra.mxu0 0.0
    %277 = vmatprep.subr.mxu0 0.0
    %278 = vmatpush1.msra.mxu0 0.0
    %279 = vmatprep.subr.mxu0 0.0
    %280 = vmatpush1.msra.mxu0 0.0
    %281 = vmatprep.subr.mxu0 0.0
    %282 = vmatpush1.msra.mxu0 0.0
    %283 = vmatprep.subr.mxu0 0.0
    %284 = vmatpush1.msra.mxu0 0.0
    %285 = vmatprep.subr.mxu0 0.0
    %286 = vmatpush1.msra.mxu0 0.0
    %287 = vmatprep.subr.mxu0 0.0
    %288 = vmatpush1.msra.mxu0 0.0
    %289 = vmatprep.subr.mxu0 0.0
    %290 = vmatpush1.msra.mxu0 0.0
    %291 = vmatprep.subr.mxu0 0.0
    %292 = vmatpush1.msra.mxu0 0.0
    %293 = vmatprep.subr.mxu0 0.0
    %294 = vmatpush1.msra.mxu0 0.0
    %295 = vmatprep.subr.mxu0 0.0
    %296 = vmatpush1.msra.mxu0 0.0
    %297 = vmatprep.subr.mxu0 0.0
    %298 = vmatpush1.msra.mxu0 0.0
    %299 = vmatprep.subr.mxu0 0.0
    %300 = vmatpush1.msra.mxu0 0.0
    %301 = vmatprep.subr.mxu0 0.0
    %302 = vmatpush1.msra.mxu0 0.0
    %303 = vmatprep.subr.mxu0 0.0
    %304 = vmatpush1.msra.mxu0 0.0
    %305 = vmatprep.subr.mxu0 0.0
    %306 = vmatpush1.msra.mxu0 0.0
    %307 = vmatprep.subr.mxu0 0.0
    %308 = vmatpush1.msra.mxu0 0.0
    %309 = vmatprep.subr.mxu0 0.0
    %310 = vmatpush1.msra.mxu0 0.0
    %311 = vmatprep.subr.mxu0 0.0
    %312 = vmatpush1.msra.mxu0 0.0
    %313 = vmatprep.subr.mxu0 0.0
    %314 = vmatpush1.msra.mxu0 0.0
    %315 = vmatprep.subr.mxu0 0.0
    %316 = vmatpush1.msra.mxu0 0.0
    %317 = vmatprep.subr.mxu0 0.0
    %318 = vmatpush1.msra.mxu0 0.0
    %319 = vmatprep.subr.mxu0 0.0
    %320 = vmatpush1.msra.mxu0 0.0
    %321 = vmatprep.subr.mxu0 0.0
    %322 = vmatpush1.msra.mxu0 0.0
    %323 = vmatprep.mubr.f32.mxu0 0.0
    %324 = vmatmul.mubr.f32.gmra.mrb[0].mxu0 %v257
    %v325 = vpop.f32.mrb[0].mxu0
    %v326 = vadd.f32 0.0, %v325
    %v327 = vpop.f32.mrb[0].mxu0
    %328 = vdwg.mxu0
    %v329 = vadd.f32 %v248, %v326
    %330 = vmatprep.subr.mxu0 0.0
    %331 = vmatpush1.msra.mxu0 %v241
    %332 = vmatprep.subr.mxu0 0.0
    %333 = vmatpush1.msra.mxu0 %v242
    %334 = vmatprep.subr.mxu0 0.0
    %335 = vmatpush1.msra.mxu0 %v243
    %336 = vmatprep.subr.mxu0 0.0
    %337 = vmatpush1.msra.mxu0 %v244
    %338 = vmatprep.subr.mxu0 0.0
    %339 = vmatpush1.msra.mxu0 0.0
    %340 = vmatprep.subr.mxu0 0.0
    %341 = vmatpush1.msra.mxu0 0.0
    %342 = vmatprep.subr.mxu0 0.0
    %343 = vmatpush1.msra.mxu0 0.0
    %344 = vmatprep.subr.mxu0 0.0
    %345 = vmatpush1.msra.mxu0 0.0
    %346 = vmatprep.subr.mxu0 0.0
    %347 = vmatpush1.msra.mxu0 0.0
    %348 = vmatprep.subr.mxu0 0.0
    %349 = vmatpush1.msra.mxu0 0.0
    %350 = vmatprep.subr.mxu0 0.0
    %351 = vmatpush1.msra.mxu0 0.0
    %352 = vmatprep.subr.mxu0 0.0
    %353 = vmatpush1.msra.mxu0 0.0
    %354 = vmatprep.subr.mxu0 0.0
    %355 = vmatpush1.msra.mxu0 0.0
    %356 = vmatprep.subr.mxu0 0.0
    %357 = vmatpush1.msra.mxu0 0.0
    %358 = vmatprep.subr.mxu0 0.0
    %359 = vmatpush1.msra.mxu0 0.0
    %360 = vmatprep.subr.mxu0 0.0
    %361 = vmatpush1.msra.mxu0 0.0
    %362 = vmatprep.subr.mxu0 0.0
    %363 = vmatpush1.msra.mxu0 0.0
    %364 = vmatprep.subr.mxu0 0.0
    %365 = vmatpush1.msra.mxu0 0.0
    %366 = vmatprep.subr.mxu0 0.0
    %367 = vmatpush1.msra.mxu0 0.0
    %368 = vmatprep.subr.mxu0 0.0
    %369 = vmatpush1.msra.mxu0 0.0
    %370 = vmatprep.subr.mxu0 0.0
    %371 = vmatpush1.msra.mxu0 0.0
    %372 = vmatprep.subr.mxu0 0.0
    %373 = vmatpush1.msra.mxu0 0.0
    %374 = vmatprep.subr.mxu0 0.0
    %375 = vmatpush1.msra.mxu0 0.0
    %376 = vmatprep.subr.mxu0 0.0
    %377 = vmatpush1.msra.mxu0 0.0
    %378 = vmatprep.subr.mxu0 0.0
    %379 = vmatpush1.msra.mxu0 0.0
    %380 = vmatprep.subr.mxu0 0.0
    %381 = vmatpush1.msra.mxu0 0.0
    %382 = vmatprep.subr.mxu0 0.0
    %383 = vmatpush1.msra.mxu0 0.0
    %384 = vmatprep.subr.mxu0 0.0
    %385 = vmatpush1.msra.mxu0 0.0
    %386 = vmatprep.subr.mxu0 0.0
    %387 = vmatpush1.msra.mxu0 0.0
    %388 = vmatprep.subr.mxu0 0.0
    %389 = vmatpush1.msra.mxu0 0.0
    %390 = vmatprep.subr.mxu0 0.0
    %391 = vmatpush1.msra.mxu0 0.0
    %392 = vmatprep.subr.mxu0 0.0
    %393 = vmatpush1.msra.mxu0 0.0
    %394 = vmatprep.mubr.f32.mxu0 0.0
    %395 = vmatmul.mubr.f32.gmra.mrb[0].mxu0 %v257
    %v396 = vpop.f32.mrb[0].mxu0
    %v397 = vadd.f32 0.0, %v396
    %v398 = vpop.f32.mrb[0].mxu0
    %399 = vdwg.mxu0
    %v400 = vadd.f32 %v254, %v397
    %v401 = vxor.u32 %v329, 2147483648
    %v402 = vmul.f32 %v401, 1.442695
    %v403 = vpow.pop %v402
    %v404 = vadd.f32 %v403, 1.0
    %v405 = vrcp.pop %v404
    %v406 = vmul.f32 1.0, %v405
    %v407 = vtanh.pop %v329
    %v408 = vmul.f32 %v406, 0.0
    %410 = vrot.lane.b32.xlu0 %v407, 64
    %v411 = vpop.permute.xlu0 %410
    %v413 = vmul.f32 %v406, %v411
    %415 = vrot.lane.b32.xlu0 %v413, 32
    %v416 = vpop.permute.xlu0 %415
    %v418 = vadd.f32 %v408, %v416
    %v419 = vtanh.pop %v418
    %421 = vrot.lane.b32.xlu0 %v419, 64
    %v422 = vpop.permute.xlu0 %421
    %v424 = vmul.f32 %v406, %v422
    %v425 = vxor.u32 %v400, 2147483648
    %v426 = vmul.f32 %v425, 1.442695
    %v427 = vpow.pop %v426
    %v428 = vadd.f32 %v427, 1.0
    %v429 = vrcp.pop %v428
    %v430 = vmul.f32 1.0, %v429
    %v431 = vtanh.pop %v400
    %v432 = vmul.f32 %v430, 0.0
    %434 = vrot.lane.b32.xlu0 %v431, 64
    %v435 = vpop.permute.xlu0 %434
    %v437 = vmul.f32 %v430, %v435
    %439 = vrot.lane.b32.xlu0 %v437, 32
    %v440 = vpop.permute.xlu0 %439
    %v442 = vadd.f32 %v432, %v440
    %v443 = vtanh.pop %v442
    %445 = vrot.lane.b32.xlu0 %v443, 64
    %v446 = vpop.permute.xlu0 %445
    %v448 = vmul.f32 %v430, %v446
    %vm449 = vcmp.gt.s32.totalorder %v236, 0
    %vm450 = vcmp.gt.s32.totalorder %v236, 7
    %v451 = vsel %vm449, 1, 0
    %452 = vset.pattern.permute.xlu0 0
    %453 = vperm.xlu0 %452, %v451
    %v454 = vpop.permute.xlu0 %453
    %vm455 = vcmp.eq.s32.totalorder %v454, 1
    %v456 = vsel %vm455, %v424, 0.0
    %v457 = vsel %vm455, %v418, 0.0
    %v458 = vsel %vm450, 1, 0
    %459 = vset.pattern.permute.xlu0 0
    %460 = vperm.xlu0 %459, %v458
    %v461 = vpop.permute.xlu0 %460
    %vm462 = vcmp.eq.s32.totalorder %v461, 1
    %v463 = vsel %vm462, %v448, 0.0
    %v464 = vsel %vm462, %v442, 0.0
    %s465 = smul.u32 1, 2
    %s466 = smul.addr %s465, 8
    %s467 = scalar_lea.vmem [#allocation2], %s466
    %v468 = vld [vmem:[%s467] sm:$0xff]
    %v469 = vld [vmem:[%s467 + $0x8] sm:$0xff]
    %s470 = smul.u32 6, 2
    %s471 = smul.addr %s470, 8
    %s472 = scalar_lea.vmem [#allocation2], %s471
    %v473 = vld [vmem:[%s472] sm:$0xff]
    %v474 = vld [vmem:[%s472 + $0x8] sm:$0xff]
    %476 = vrot.lane.b32.xlu0 %v456, 32
    %v477 = vpop.permute.xlu0 %476
    %v478 = vsel %vm255, %v477, 0
    %480 = vmatprep.subr.mxu0 0.0
    %481 = vmatpush1.msra.mxu0 %v237
    %482 = vmatprep.subr.mxu0 0.0
    %483 = vmatpush1.msra.mxu0 %v238
    %484 = vmatprep.subr.mxu0 0.0
    %485 = vmatpush1.msra.mxu0 %v239
    %486 = vmatprep.subr.mxu0 0.0
    %487 = vmatpush1.msra.mxu0 %v240
    %488 = vmatprep.subr.mxu0 0.0
    %489 = vmatpush1.msra.mxu0 0.0
    %490 = vmatprep.subr.mxu0 0.0
    %491 = vmatpush1.msra.mxu0 0.0
    %492 = vmatprep.subr.mxu0 0.0
    %493 = vmatpush1.msra.mxu0 0.0
    %494 = vmatprep.subr.mxu0 0.0
    %495 = vmatpush1.msra.mxu0 0.0
    %496 = vmatprep.subr.mxu0 0.0
    %497 = vmatpush1.msra.mxu0 0.0
    %498 = vmatprep.subr.mxu0 0.0
    %499 = vmatpush1.msra.mxu0 0.0
    %500 = vmatprep.subr.mxu0 0.0
    %501 = vmatpush1.msra.mxu0 0.0
    %502 = vmatprep.subr.mxu0 0.0
    %503 = vmatpush1.msra.mxu0 0.0
    %504 = vmatprep.subr.mxu0 0.0
    %505 = vmatpush1.msra.mxu0 0.0
    %506 = vmatprep.subr.mxu0 0.0
    %507 = vmatpush1.msra.mxu0 0.0
    %508 = vmatprep.subr.mxu0 0.0
    %509 = vmatpush1.msra.mxu0 0.0
    %510 = vmatprep.subr.mxu0 0.0
    %511 = vmatpush1.msra.mxu0 0.0
    %512 = vmatprep.subr.mxu0 0.0
    %513 = vmatpush1.msra.mxu0 0.0
    %514 = vmatprep.subr.mxu0 0.0
    %515 = vmatpush1.msra.mxu0 0.0
    %516 = vmatprep.subr.mxu0 0.0
    %517 = vmatpush1.msra.mxu0 0.0
    %518 = vmatprep.subr.mxu0 0.0
    %519 = vmatpush1.msra.mxu0 0.0
    %520 = vmatprep.subr.mxu0 0.0
    %521 = vmatpush1.msra.mxu0 0.0
    %522 = vmatprep.subr.mxu0 0.0
    %523 = vmatpush1.msra.mxu0 0.0
    %524 = vmatprep.subr.mxu0 0.0
    %525 = vmatpush1.msra.mxu0 0.0
    %526 = vmatprep.subr.mxu0 0.0
    %527 = vmatpush1.msra.mxu0 0.0
    %528 = vmatprep.subr.mxu0 0.0
    %529 = vmatpush1.msra.mxu0 0.0
    %530 = vmatprep.subr.mxu0 0.0
    %531 = vmatpush1.msra.mxu0 0.0
    %532 = vmatprep.subr.mxu0 0.0
    %533 = vmatpush1.msra.mxu0 0.0
    %534 = vmatprep.subr.mxu0 0.0
    %535 = vmatpush1.msra.mxu0 0.0
    %536 = vmatprep.subr.mxu0 0.0
    %537 = vmatpush1.msra.mxu0 0.0
    %538 = vmatprep.subr.mxu0 0.0
    %539 = vmatpush1.msra.mxu0 0.0
    %540 = vmatprep.subr.mxu0 0.0
    %541 = vmatpush1.msra.mxu0 0.0
    %542 = vmatprep.subr.mxu0 0.0
    %543 = vmatpush1.msra.mxu0 0.0
    %544 = vmatprep.mubr.f32.mxu0 0.0
    %545 = vmatmul.mubr.f32.gmra.mrb[0].mxu0 %v478
    %v546 = vpop.f32.mrb[0].mxu0
    %v547 = vadd.f32 0.0, %v546
    %v548 = vpop.f32.mrb[0].mxu0
    %549 = vdwg.mxu0
    %v550 = vadd.f32 %v468, %v547
    %552 = vrot.lane.b32.xlu0 %v463, 32
    %v553 = vpop.permute.xlu0 %552
    %v554 = vsel %vm255, %v553, 0
    %556 = vmatprep.subr.mxu0 0.0
    %557 = vmatpush1.msra.mxu0 %v241
    %558 = vmatprep.subr.mxu0 0.0
    %559 = vmatpush1.msra.mxu0 %v242
    %560 = vmatprep.subr.mxu0 0.0
    %561 = vmatpush1.msra.mxu0 %v243
    %562 = vmatprep.subr.mxu0 0.0
    %563 = vmatpush1.msra.mxu0 %v244
    %564 = vmatprep.subr.mxu0 0.0
    %565 = vmatpush1.msra.mxu0 0.0
    %566 = vmatprep.subr.mxu0 0.0
    %567 = vmatpush1.msra.mxu0 0.0
    %568 = vmatprep.subr.mxu0 0.0
    %569 = vmatpush1.msra.mxu0 0.0
    %570 = vmatprep.subr.mxu0 0.0
    %571 = vmatpush1.msra.mxu0 0.0
    %572 = vmatprep.subr.mxu0 0.0
    %573 = vmatpush1.msra.mxu0 0.0
    %574 = vmatprep.subr.mxu0 0.0
    %575 = vmatpush1.msra.mxu0 0.0
    %576 = vmatprep.subr.mxu0 0.0
    %577 = vmatpush1.msra.mxu0 0.0
    %578 = vmatprep.subr.mxu0 0.0
    %579 = vmatpush1.msra.mxu0 0.0
    %580 = vmatprep.subr.mxu0 0.0
    %581 = vmatpush1.msra.mxu0 0.0
    %582 = vmatprep.subr.mxu0 0.0
    %583 = vmatpush1.msra.mxu0 0.0
    %584 = vmatprep.subr.mxu0 0.0
    %585 = vmatpush1.msra.mxu0 0.0
    %586 = vmatprep.subr.mxu0 0.0
    %587 = vmatpush1.msra.mxu0 0.0
    %588 = vmatprep.subr.mxu0 0.0
    %589 = vmatpush1.msra.mxu0 0.0
    %590 = vmatprep.subr.mxu0 0.0
    %591 = vmatpush1.msra.mxu0 0.0
    %592 = vmatprep.subr.mxu0 0.0
    %593 = vmatpush1.msra.mxu0 0.0
    %594 = vmatprep.subr.mxu0 0.0
    %595 = vmatpush1.msra.mxu0 0.0
    %596 = vmatprep.subr.mxu0 0.0
    %597 = vmatpush1.msra.mxu0 0.0
    %598 = vmatprep.subr.mxu0 0.0
    %599 = vmatpush1.msra.mxu0 0.0
    %600 = vmatprep.subr.mxu0 0.0
    %601 = vmatpush1.msra.mxu0 0.0
    %602 = vmatprep.subr.mxu0 0.0
    %603 = vmatpush1.msra.mxu0 0.0
    %604 = vmatprep.subr.mxu0 0.0
    %605 = vmatpush1.msra.mxu0 0.0
    %606 = vmatprep.subr.mxu0 0.0
    %607 = vmatpush1.msra.mxu0 0.0
    %608 = vmatprep.subr.mxu0 0.0
    %609 = vmatpush1.msra.mxu0 0.0
    %610 = vmatprep.subr.mxu0 0.0
    %611 = vmatpush1.msra.mxu0 0.0
    %612 = vmatprep.subr.mxu0 0.0
    %613 = vmatpush1.msra.mxu0 0.0
    %614 = vmatprep.subr.mxu0 0.0
    %615 = vmatpush1.msra.mxu0 0.0
    %616 = vmatprep.subr.mxu0 0.0
    %617 = vmatpush1.msra.mxu0 0.0
    %618 = vmatprep.subr.mxu0 0.0
    %619 = vmatpush1.msra.mxu0 0.0
    %620 = vmatprep.mubr.f32.mxu0 0.0
    %621 = vmatmul.mubr.f32.gmra.mrb[0].mxu0 %v554
    %v622 = vpop.f32.mrb[0].mxu0
    %v623 = vadd.f32 0.0, %v622
    %v624 = vpop.f32.mrb[0].mxu0
    %625 = vdwg.mxu0
    %v626 = vadd.f32 %v474, %v623
    %v627 = vxor.u32 %v550, 2147483648
    %v628 = vmul.f32 %v627, 1.442695
    %v629 = vpow.pop %v628
    %v630 = vadd.f32 %v629, 1.0
    %v631 = vrcp.pop %v630
    %v632 = vmul.f32 1.0, %v631
    %v633 = vtanh.pop %v550
    %v634 = vmul.f32 %v632, %v457
    %636 = vrot.lane.b32.xlu0 %v633, 64
    %v637 = vpop.permute.xlu0 %636
    %v639 = vmul.f32 %v632, %v637
    %641 = vrot.lane.b32.xlu0 %v639, 32
    %v642 = vpop.permute.xlu0 %641
    %v644 = vadd.f32 %v634, %v642
    %v645 = vtanh.pop %v644
    %647 = vrot.lane.b32.xlu0 %v645, 64
    %v648 = vpop.permute.xlu0 %647
    %v650 = vmul.f32 %v632, %v648
    %v651 = vxor.u32 %v626, 2147483648
    %v652 = vmul.f32 %v651, 1.442695
    %v653 = vpow.pop %v652
    %v654 = vadd.f32 %v653, 1.0
    %v655 = vrcp.pop %v654
    %v656 = vmul.f32 1.0, %v655
    %v657 = vtanh.pop %v626
    %v658 = vmul.f32 %v656, %v464
    %660 = vrot.lane.b32.xlu0 %v657, 64
    %v661 = vpop.permute.xlu0 %660
    %v663 = vmul.f32 %v656, %v661
    %665 = vrot.lane.b32.xlu0 %v663, 32
    %v666 = vpop.permute.xlu0 %665
    %v668 = vadd.f32 %v658, %v666
    %v669 = vtanh.pop %v668
    %671 = vrot.lane.b32.xlu0 %v669, 64
    %v672 = vpop.permute.xlu0 %671
    %v674 = vmul.f32 %v656, %v672
    %vm675 = vcmp.gt.s32.totalorder %v236, 1
    %vm676 = vcmp.gt.s32.totalorder %v236, 6
    %v677 = vsel %vm675, 1, 0
    %678 = vset.pattern.permute.xlu0 0
    %679 = vperm.xlu0 %678, %v677
    %v680 = vpop.permute.xlu0 %679
    %vm681 = vcmp.eq.s32.totalorder %v680, 1
    %v682 = vsel %vm681, %v650, %v456
    %v683 = vsel %vm681, %v644, %v457
    %v684 = vsel %vm676, 1, 0
    %685 = vset.pattern.permute.xlu0 0
    %686 = vperm.xlu0 %685, %v684
    %v687 = vpop.permute.xlu0 %686
    %vm688 = vcmp.eq.s32.totalorder %v687, 1
    %v689 = vsel %vm688, %v674, %v463
    %v690 = vsel %vm688, %v668, %v464
    %s691 = smul.u32 2, 2
    %s692 = smul.addr %s691, 8
    %s693 = scalar_lea.vmem [#allocation2], %s692
    %v694 = vld [vmem:[%s693] sm:$0xff]
    %v695 = vld [vmem:[%s693 + $0x8] sm:$0xff]
    %s696 = smul.u32 5, 2
    %s697 = smul.addr %s696, 8
    %s698 = scalar_lea.vmem [#allocation2], %s697
    %v699 = vld [vmem:[%s698] sm:$0xff]
    %v700 = vld [vmem:[%s698 + $0x8] sm:$0xff]
    %702 = vrot.lane.b32.xlu0 %v682, 32
    %v703 = vpop.permute.xlu0 %702
    %v704 = vsel %vm255, %v703, 0
    %706 = vmatprep.subr.mxu0 0.0
    %707 = vmatpush1.msra.mxu0 %v237
    %708 = vmatprep.subr.mxu0 0.0
    %709 = vmatpush1.msra.mxu0 %v238
    %710 = vmatprep.subr.mxu0 0.0
    %711 = vmatpush1.msra.mxu0 %v239
    %712 = vmatprep.subr.mxu0 0.0
    %713 = vmatpush1.msra.mxu0 %v240
    %714 = vmatprep.subr.mxu0 0.0
    %715 = vmatpush1.msra.mxu0 0.0
    %716 = vmatprep.subr.mxu0 0.0
    %717 = vmatpush1.msra.mxu0 0.0
    %718 = vmatprep.subr.mxu0 0.0
    %719 = vmatpush1.msra.mxu0 0.0
    %720 = vmatprep.subr.mxu0 0.0
    %721 = vmatpush1.msra.mxu0 0.0
    %722 = vmatprep.subr.mxu0 0.0
    %723 = vmatpush1.msra.mxu0 0.0
    %724 = vmatprep.subr.mxu0 0.0
    %725 = vmatpush1.msra.mxu0 0.0
    %726 = vmatprep.subr.mxu0 0.0
    %727 = vmatpush1.msra.mxu0 0.0
    %728 = vmatprep.subr.mxu0 0.0
    %729 = vmatpush1.msra.mxu0 0.0
    %730 = vmatprep.subr.mxu0 0.0
    %731 = vmatpush1.msra.mxu0 0.0
    %732 = vmatprep.subr.mxu0 0.0
    %733 = vmatpush1.msra.mxu0 0.0
    %734 = vmatprep.subr.mxu0 0.0
    %735 = vmatpush1.msra.mxu0 0.0
    %736 = vmatprep.subr.mxu0 0.0
    %737 = vmatpush1.msra.mxu0 0.0
    %738 = vmatprep.subr.mxu0 0.0
    %739 = vmatpush1.msra.mxu0 0.0
    %740 = vmatprep.subr.mxu0 0.0
    %741 = vmatpush1.msra.mxu0 0.0
    %742 = vmatprep.subr.mxu0 0.0
    %743 = vmatpush1.msra.mxu0 0.0
    %744 = vmatprep.subr.mxu0 0.0
    %745 = vmatpush1.msra.mxu0 0.0
    %746 = vmatprep.subr.mxu0 0.0
    %747 = vmatpush1.msra.mxu0 0.0
    %748 = vmatprep.subr.mxu0 0.0
    %749 = vmatpush1.msra.mxu0 0.0
    %750 = vmatprep.subr.mxu0 0.0
    %751 = vmatpush1.msra.mxu0 0.0
    %752 = vmatprep.subr.mxu0 0.0
    %753 = vmatpush1.msra.mxu0 0.0
    %754 = vmatprep.subr.mxu0 0.0
    %755 = vmatpush1.msra.mxu0 0.0
    %756 = vmatprep.subr.mxu0 0.0
    %757 = vmatpush1.msra.mxu0 0.0
    %758 = vmatprep.subr.mxu0 0.0
    %759 = vmatpush1.msra.mxu0 0.0
    %760 = vmatprep.subr.mxu0 0.0
    %761 = vmatpush1.msra.mxu0 0.0
    %762 = vmatprep.subr.mxu0 0.0
    %763 = vmatpush1.msra.mxu0 0.0
    %764 = vmatprep.subr.mxu0 0.0
    %765 = vmatpush1.msra.mxu0 0.0
    %766 = vmatprep.subr.mxu0 0.0
    %767 = vmatpush1.msra.mxu0 0.0
    %768 = vmatprep.subr.mxu0 0.0
    %769 = vmatpush1.msra.mxu0 0.0
    %770 = vmatprep.mubr.f32.mxu0 0.0
    %771 = vmatmul.mubr.f32.gmra.mrb[0].mxu0 %v704
    %v772 = vpop.f32.mrb[0].mxu0
    %v773 = vadd.f32 0.0, %v772
    %v774 = vpop.f32.mrb[0].mxu0
    %775 = vdwg.mxu0
    %v776 = vadd.f32 %v694, %v773
    %778 = vrot.lane.b32.xlu0 %v689, 32
    %v779 = vpop.permute.xlu0 %778
    %v780 = vsel %vm255, %v779, 0
    %782 = vmatprep.subr.mxu0 0.0
    %783 = vmatpush1.msra.mxu0 %v241
    %784 = vmatprep.subr.mxu0 0.0
    %785 = vmatpush1.msra.mxu0 %v242
    %786 = vmatprep.subr.mxu0 0.0
    %787 = vmatpush1.msra.mxu0 %v243
    %788 = vmatprep.subr.mxu0 0.0
    %789 = vmatpush1.msra.mxu0 %v244
    %790 = vmatprep.subr.mxu0 0.0
    %791 = vmatpush1.msra.mxu0 0.0
    %792 = vmatprep.subr.mxu0 0.0
    %793 = vmatpush1.msra.mxu0 0.0
    %794 = vmatprep.subr.mxu0 0.0
    %795 = vmatpush1.msra.mxu0 0.0
    %796 = vmatprep.subr.mxu0 0.0
    %797 = vmatpush1.msra.mxu0 0.0
    %798 = vmatprep.subr.mxu0 0.0
    %799 = vmatpush1.msra.mxu0 0.0
    %800 = vmatprep.subr.mxu0 0.0
    %801 = vmatpush1.msra.mxu0 0.0
    %802 = vmatprep.subr.mxu0 0.0
    %803 = vmatpush1.msra.mxu0 0.0
    %804 = vmatprep.subr.mxu0 0.0
    %805 = vmatpush1.msra.mxu0 0.0
    %806 = vmatprep.subr.mxu0 0.0
    %807 = vmatpush1.msra.mxu0 0.0
    %808 = vmatprep.subr.mxu0 0.0
    %809 = vmatpush1.msra.mxu0 0.0
    %810 = vmatprep.subr.mxu0 0.0
    %811 = vmatpush1.msra.mxu0 0.0
    %812 = vmatprep.subr.mxu0 0.0
    %813 = vmatpush1.msra.mxu0 0.0
    %814 = vmatprep.subr.mxu0 0.0
    %815 = vmatpush1.msra.mxu0 0.0
    %816 = vmatprep.subr.mxu0 0.0
    %817 = vmatpush1.msra.mxu0 0.0
    %818 = vmatprep.subr.mxu0 0.0
    %819 = vmatpush1.msra.mxu0 0.0
    %820 = vmatprep.subr.mxu0 0.0
    %821 = vmatpush1.msra.mxu0 0.0
    %822 = vmatprep.subr.mxu0 0.0
    %823 = vmatpush1.msra.mxu0 0.0
    %824 = vmatprep.subr.mxu0 0.0
    %825 = vmatpush1.msra.mxu0 0.0
    %826 = vmatprep.subr.mxu0 0.0
    %827 = vmatpush1.msra.mxu0 0.0
    %828 = vmatprep.subr.mxu0 0.0
    %829 = vmatpush1.msra.mxu0 0.0
    %830 = vmatprep.subr.mxu0 0.0
    %831 = vmatpush1.msra.mxu0 0.0
    %832 = vmatprep.subr.mxu0 0.0
    %833 = vmatpush1.msra.mxu0 0.0
    %834 = vmatprep.subr.mxu0 0.0
    %835 = vmatpush1.msra.mxu0 0.0
    %836 = vmatprep.subr.mxu0 0.0
    %837 = vmatpush1.msra.mxu0 0.0
    %838 = vmatprep.subr.mxu0 0.0
    %839 = vmatpush1.msra.mxu0 0.0
    %840 = vmatprep.subr.mxu0 0.0
    %841 = vmatpush1.msra.mxu0 0.0
    %842 = vmatprep.subr.mxu0 0.0
    %843 = vmatpush1.msra.mxu0 0.0
    %844 = vmatprep.subr.mxu0 0.0
    %845 = vmatpush1.msra.mxu0 0.0
    %846 = vmatprep.mubr.f32.mxu0 0.0
    %847 = vmatmul.mubr.f32.gmra.mrb[0].mxu0 %v780
    %v848 = vpop.f32.mrb[0].mxu0
    %v849 = vadd.f32 0.0, %v848
    %v850 = vpop.f32.mrb[0].mxu0
    %851 = vdwg.mxu0
    %v852 = vadd.f32 %v700, %v849
    %v853 = vxor.u32 %v776, 2147483648
    %v854 = vmul.f32 %v853, 1.442695
    %v855 = vpow.pop %v854
    %v856 = vadd.f32 %v855, 1.0
    %v857 = vrcp.pop %v856
    %v858 = vmul.f32 1.0, %v857
    %v859 = vtanh.pop %v776
    %v860 = vmul.f32 %v858, %v683
    %862 = vrot.lane.b32.xlu0 %v859, 64
    %v863 = vpop.permute.xlu0 %862
    %v865 = vmul.f32 %v858, %v863
    %867 = vrot.lane.b32.xlu0 %v865, 32
    %v868 = vpop.permute.xlu0 %867
    %v870 = vadd.f32 %v860, %v868
    %v871 = vtanh.pop %v870
    %873 = vrot.lane.b32.xlu0 %v871, 64
    %v874 = vpop.permute.xlu0 %873
    %v876 = vmul.f32 %v858, %v874
    %v877 = vxor.u32 %v852, 2147483648
    %v878 = vmul.f32 %v877, 1.442695
    %v879 = vpow.pop %v878
    %v880 = vadd.f32 %v879, 1.0
    %v881 = vrcp.pop %v880
    %v882 = vmul.f32 1.0, %v881
    %v883 = vtanh.pop %v852
    %v884 = vmul.f32 %v882, %v690
    %886 = vrot.lane.b32.xlu0 %v883, 64
    %v887 = vpop.permute.xlu0 %886
    %v889 = vmul.f32 %v882, %v887
    %891 = vrot.lane.b32.xlu0 %v889, 32
    %v892 = vpop.permute.xlu0 %891
    %v894 = vadd.f32 %v884, %v892
    %v895 = vtanh.pop %v894
    %897 = vrot.lane.b32.xlu0 %v895, 64
    %v898 = vpop.permute.xlu0 %897
    %v900 = vmul.f32 %v882, %v898
    %vm901 = vcmp.gt.s32.totalorder %v236, 2
    %vm902 = vcmp.gt.s32.totalorder %v236, 5
    %v903 = vsel %vm901, 1, 0
    %904 = vset.pattern.permute.xlu0 0
    %905 = vperm.xlu0 %904, %v903
    %v906 = vpop.permute.xlu0 %905
    %vm907 = vcmp.eq.s32.totalorder %v906, 1
    %v908 = vsel %vm907, %v876, %v682
    %v909 = vsel %vm907, %v870, %v683
    %v910 = vsel %vm902, 1, 0
    %911 = vset.pattern.permute.xlu0 0
    %912 = vperm.xlu0 %911, %v910
    %v913 = vpop.permute.xlu0 %912
    %vm914 = vcmp.eq.s32.totalorder %v913, 1
    %v915 = vsel %vm914, %v900, %v689
    %v916 = vsel %vm914, %v894, %v690
    %s917 = smul.u32 3, 2
    %s918 = smul.addr %s917, 8
    %s919 = scalar_lea.vmem [#allocation2], %s918
    %v920 = vld [vmem:[%s919] sm:$0xff]
    %v921 = vld [vmem:[%s919 + $0x8] sm:$0xff]
    %s922 = smul.u32 4, 2
    %s923 = smul.addr %s922, 8
    %s924 = scalar_lea.vmem [#allocation2], %s923
    %v925 = vld [vmem:[%s924] sm:$0xff]
    %v926 = vld [vmem:[%s924 + $0x8] sm:$0xff]
    %928 = vrot.lane.b32.xlu0 %v908, 32
    %v929 = vpop.permute.xlu0 %928
    %v930 = vsel %vm255, %v929, 0
    %932 = vmatprep.subr.mxu0 0.0
    %933 = vmatpush1.msra.mxu0 %v237
    %934 = vmatprep.subr.mxu0 0.0
    %935 = vmatpush1.msra.mxu0 %v238
    %936 = vmatprep.subr.mxu0 0.0
    %937 = vmatpush1.msra.mxu0 %v239
    %938 = vmatprep.subr.mxu0 0.0
    %939 = vmatpush1.msra.mxu0 %v240
    %940 = vmatprep.subr.mxu0 0.0
    %941 = vmatpush1.msra.mxu0 0.0
    %942 = vmatprep.subr.mxu0 0.0
    %943 = vmatpush1.msra.mxu0 0.0
    %944 = vmatprep.subr.mxu0 0.0
    %945 = vmatpush1.msra.mxu0 0.0
    %946 = vmatprep.subr.mxu0 0.0
    %947 = vmatpush1.msra.mxu0 0.0
    %948 = vmatprep.subr.mxu0 0.0
    %949 = vmatpush1.msra.mxu0 0.0
    %950 = vmatprep.subr.mxu0 0.0
    %951 = vmatpush1.msra.mxu0 0.0
    %952 = vmatprep.subr.mxu0 0.0
    %953 = vmatpush1.msra.mxu0 0.0
    %954 = vmatprep.subr.mxu0 0.0
    %955 = vmatpush1.msra.mxu0 0.0
    %956 = vmatprep.subr.mxu0 0.0
    %957 = vmatpush1.msra.mxu0 0.0
    %958 = vmatprep.subr.mxu0 0.0
    %959 = vmatpush1.msra.mxu0 0.0
    %960 = vmatprep.subr.mxu0 0.0
    %961 = vmatpush1.msra.mxu0 0.0
    %962 = vmatprep.subr.mxu0 0.0
    %963 = vmatpush1.msra.mxu0 0.0
    %964 = vmatprep.subr.mxu0 0.0
    %965 = vmatpush1.msra.mxu0 0.0
    %966 = vmatprep.subr.mxu0 0.0
    %967 = vmatpush1.msra.mxu0 0.0
    %968 = vmatprep.subr.mxu0 0.0
    %969 = vmatpush1.msra.mxu0 0.0
    %970 = vmatprep.subr.mxu0 0.0
    %971 = vmatpush1.msra.mxu0 0.0
    %972 = vmatprep.subr.mxu0 0.0
    %973 = vmatpush1.msra.mxu0 0.0
    %974 = vmatprep.subr.mxu0 0.0
    %975 = vmatpush1.msra.mxu0 0.0
    %976 = vmatprep.subr.mxu0 0.0
    %977 = vmatpush1.msra.mxu0 0.0
    %978 = vmatprep.subr.mxu0 0.0
    %979 = vmatpush1.msra.mxu0 0.0
    %980 = vmatprep.subr.mxu0 0.0
    %981 = vmatpush1.msra.mxu0 0.0
    %982 = vmatprep.subr.mxu0 0.0
    %983 = vmatpush1.msra.mxu0 0.0
    %984 = vmatprep.subr.mxu0 0.0
    %985 = vmatpush1.msra.mxu0 0.0
    %986 = vmatprep.subr.mxu0 0.0
    %987 = vmatpush1.msra.mxu0 0.0
    %988 = vmatprep.subr.mxu0 0.0
    %989 = vmatpush1.msra.mxu0 0.0
    %990 = vmatprep.subr.mxu0 0.0
    %991 = vmatpush1.msra.mxu0 0.0
    %992 = vmatprep.subr.mxu0 0.0
    %993 = vmatpush1.msra.mxu0 0.0
    %994 = vmatprep.subr.mxu0 0.0
    %995 = vmatpush1.msra.mxu0 0.0
    %996 = vmatprep.mubr.f32.mxu0 0.0
    %997 = vmatmul.mubr.f32.gmra.mrb[0].mxu0 %v930
    %v998 = vpop.f32.mrb[0].mxu0
    %v999 = vadd.f32 0.0, %v998
    %v1000 = vpop.f32.mrb[0].mxu0
    %1001 = vdwg.mxu0
    %v1002 = vadd.f32 %v920, %v999
    %1004 = vrot.lane.b32.xlu0 %v915, 32
    %v1005 = vpop.permute.xlu0 %1004
    %v1006 = vsel %vm255, %v1005, 0
    %1008 = vmatprep.subr.mxu0 0.0
    %1009 = vmatpush1.msra.mxu0 %v241
    %1010 = vmatprep.subr.mxu0 0.0
    %1011 = vmatpush1.msra.mxu0 %v242
    %1012 = vmatprep.subr.mxu0 0.0
    %1013 = vmatpush1.msra.mxu0 %v243
    %1014 = vmatprep.subr.mxu0 0.0
    %1015 = vmatpush1.msra.mxu0 %v244
    %1016 = vmatprep.subr.mxu0 0.0
    %1017 = vmatpush1.msra.mxu0 0.0
    %1018 = vmatprep.subr.mxu0 0.0
    %1019 = vmatpush1.msra.mxu0 0.0
    %1020 = vmatprep.subr.mxu0 0.0
    %1021 = vmatpush1.msra.mxu0 0.0
    %1022 = vmatprep.subr.mxu0 0.0
    %1023 = vmatpush1.msra.mxu0 0.0
    %1024 = vmatprep.subr.mxu0 0.0
    %1025 = vmatpush1.msra.mxu0 0.0
    %1026 = vmatprep.subr.mxu0 0.0
    %1027 = vmatpush1.msra.mxu0 0.0
    %1028 = vmatprep.subr.mxu0 0.0
    %1029 = vmatpush1.msra.mxu0 0.0
    %1030 = vmatprep.subr.mxu0 0.0
    %1031 = vmatpush1.msra.mxu0 0.0
    %1032 = vmatprep.subr.mxu0 0.0
    %1033 = vmatpush1.msra.mxu0 0.0
    %1034 = vmatprep.subr.mxu0 0.0
    %1035 = vmatpush1.msra.mxu0 0.0
    %1036 = vmatprep.subr.mxu0 0.0
    %1037 = vmatpush1.msra.mxu0 0.0
    %1038 = vmatprep.subr.mxu0 0.0
    %1039 = vmatpush1.msra.mxu0 0.0
    %1040 = vmatprep.subr.mxu0 0.0
    %1041 = vmatpush1.msra.mxu0 0.0
    %1042 = vmatprep.subr.mxu0 0.0
    %1043 = vmatpush1.msra.mxu0 0.0
    %1044 = vmatprep.subr.mxu0 0.0
    %1045 = vmatpush1.msra.mxu0 0.0
    %1046 = vmatprep.subr.mxu0 0.0
    %1047 = vmatpush1.msra.mxu0 0.0
    %1048 = vmatprep.subr.mxu0 0.0
    %1049 = vmatpush1.msra.mxu0 0.0
    %1050 = vmatprep.subr.mxu0 0.0
    %1051 = vmatpush1.msra.mxu0 0.0
    %1052 = vmatprep.subr.mxu0 0.0
    %1053 = vmatpush1.msra.mxu0 0.0
    %1054 = vmatprep.subr.mxu0 0.0
    %1055 = vmatpush1.msra.mxu0 0.0
    %1056 = vmatprep.subr.mxu0 0.0
    %1057 = vmatpush1.msra.mxu0 0.0
    %1058 = vmatprep.subr.mxu0 0.0
    %1059 = vmatpush1.msra.mxu0 0.0
    %1060 = vmatprep.subr.mxu0 0.0
    %1061 = vmatpush1.msra.mxu0 0.0
    %1062 = vmatprep.subr.mxu0 0.0
    %1063 = vmatpush1.msra.mxu0 0.0
    %1064 = vmatprep.subr.mxu0 0.0
    %1065 = vmatpush1.msra.mxu0 0.0
    %1066 = vmatprep.subr.mxu0 0.0
    %1067 = vmatpush1.msra.mxu0 0.0
    %1068 = vmatprep.subr.mxu0 0.0
    %1069 = vmatpush1.msra.mxu0 0.0
    %1070 = vmatprep.subr.mxu0 0.0
    %1071 = vmatpush1.msra.mxu0 0.0
    %1072 = vmatprep.mubr.f32.mxu0 0.0
    %1073 = vmatmul.mubr.f32.gmra.mrb[0].mxu0 %v1006
    %v1074 = vpop.f32.mrb[0].mxu0
    %v1075 = vadd.f32 0.0, %v1074
    %v1076 = vpop.f32.mrb[0].mxu0
    %1077 = vdwg.mxu0
    %v1078 = vadd.f32 %v926, %v1075
    %v1079 = vxor.u32 %v1002, 2147483648
    %v1080 = vmul.f32 %v1079, 1.442695
    %v1081 = vpow.pop %v1080
    %v1082 = vadd.f32 %v1081, 1.0
    %v1083 = vrcp.pop %v1082
    %v1084 = vmul.f32 1.0, %v1083
    %v1085 = vtanh.pop %v1002
    %v1086 = vmul.f32 %v1084, %v909
    %1088 = vrot.lane.b32.xlu0 %v1085, 64
    %v1089 = vpop.permute.xlu0 %1088
    %v1091 = vmul.f32 %v1084, %v1089
    %1093 = vrot.lane.b32.xlu0 %v1091, 32
    %v1094 = vpop.permute.xlu0 %1093
    %v1096 = vadd.f32 %v1086, %v1094
    %v1097 = vtanh.pop %v1096
    %1099 = vrot.lane.b32.xlu0 %v1097, 64
    %v1100 = vpop.permute.xlu0 %1099
    %v1102 = vmul.f32 %v1084, %v1100
    %v1103 = vxor.u32 %v1078, 2147483648
    %v1104 = vmul.f32 %v1103, 1.442695
    %v1105 = vpow.pop %v1104
    %v1106 = vadd.f32 %v1105, 1.0
    %v1107 = vrcp.pop %v1106
    %v1108 = vmul.f32 1.0, %v1107
    %v1109 = vtanh.pop %v1078
    %v1110 = vmul.f32 %v1108, %v916
    %1112 = vrot.lane.b32.xlu0 %v1109, 64
    %v1113 = vpop.permute.xlu0 %1112
    %v1115 = vmul.f32 %v1108, %v1113
    %1117 = vrot.lane.b32.xlu0 %v1115, 32
    %v1118 = vpop.permute.xlu0 %1117
    %v1120 = vadd.f32 %v1110, %v1118
    %v1121 = vtanh.pop %v1120
    %1123 = vrot.lane.b32.xlu0 %v1121, 64
    %v1124 = vpop.permute.xlu0 %1123
    %v1126 = vmul.f32 %v1108, %v1124
    %vm1127 = vcmp.gt.s32.totalorder %v236, 3
    %vm1128 = vcmp.gt.s32.totalorder %v236, 4
    %v1129 = vsel %vm1127, 1, 0
    %1130 = vset.pattern.permute.xlu0 0
    %1131 = vperm.xlu0 %1130, %v1129
    %v1132 = vpop.permute.xlu0 %1131
    %vm1133 = vcmp.eq.s32.totalorder %v1132, 1
    %v1134 = vsel %vm1133, %v1102, %v908
    %v1135 = vsel %vm1133, %v1096, %v909
    %v1136 = vsel %vm1128, 1, 0
    %1137 = vset.pattern.permute.xlu0 0
    %1138 = vperm.xlu0 %1137, %v1136
    %v1139 = vpop.permute.xlu0 %1138
    %vm1140 = vcmp.eq.s32.totalorder %v1139, 1
    %v1141 = vsel %vm1140, %v1126, %v915
    %v1142 = vsel %vm1140, %v1120, %v916
    %1144 = vrot.lane.b32.xlu0 %v1134, 32
    %v1145 = vpop.permute.xlu0 %1144
    %v1146 = vsel %vm255, %v1145, 0
    %1148 = vmatprep.subr.mxu0 0.0
    %1149 = vmatpush1.msra.mxu0 %v237
    %1150 = vmatprep.subr.mxu0 0.0
    %1151 = vmatpush1.msra.mxu0 %v238
    %1152 = vmatprep.subr.mxu0 0.0
    %1153 = vmatpush1.msra.mxu0 %v239
    %1154 = vmatprep.subr.mxu0 0.0
    %1155 = vmatpush1.msra.mxu0 %v240
    %1156 = vmatprep.subr.mxu0 0.0
    %1157 = vmatpush1.msra.mxu0 0.0
    %1158 = vmatprep.subr.mxu0 0.0
    %1159 = vmatpush1.msra.mxu0 0.0
    %1160 = vmatprep.subr.mxu0 0.0
    %1161 = vmatpush1.msra.mxu0 0.0
    %1162 = vmatprep.subr.mxu0 0.0
    %1163 = vmatpush1.msra.mxu0 0.0
    %1164 = vmatprep.subr.mxu0 0.0
    %1165 = vmatpush1.msra.mxu0 0.0
    %1166 = vmatprep.subr.mxu0 0.0
    %1167 = vmatpush1.msra.mxu0 0.0
    %1168 = vmatprep.subr.mxu0 0.0
    %1169 = vmatpush1.msra.mxu0 0.0
    %1170 = vmatprep.subr.mxu0 0.0
    %1171 = vmatpush1.msra.mxu0 0.0
    %1172 = vmatprep.subr.mxu0 0.0
    %1173 = vmatpush1.msra.mxu0 0.0
    %1174 = vmatprep.subr.mxu0 0.0
    %1175 = vmatpush1.msra.mxu0 0.0
    %1176 = vmatprep.subr.mxu0 0.0
    %1177 = vmatpush1.msra.mxu0 0.0
    %1178 = vmatprep.subr.mxu0 0.0
    %1179 = vmatpush1.msra.mxu0 0.0
    %1180 = vmatprep.subr.mxu0 0.0
    %1181 = vmatpush1.msra.mxu0 0.0
    %1182 = vmatprep.subr.mxu0 0.0
    %1183 = vmatpush1.msra.mxu0 0.0
    %1184 = vmatprep.subr.mxu0 0.0
    %1185 = vmatpush1.msra.mxu0 0.0
    %1186 = vmatprep.subr.mxu0 0.0
    %1187 = vmatpush1.msra.mxu0 0.0
    %1188 = vmatprep.subr.mxu0 0.0
    %1189 = vmatpush1.msra.mxu0 0.0
    %1190 = vmatprep.subr.mxu0 0.0
    %1191 = vmatpush1.msra.mxu0 0.0
    %1192 = vmatprep.subr.mxu0 0.0
    %1193 = vmatpush1.msra.mxu0 0.0
    %1194 = vmatprep.subr.mxu0 0.0
    %1195 = vmatpush1.msra.mxu0 0.0
    %1196 = vmatprep.subr.mxu0 0.0
    %1197 = vmatpush1.msra.mxu0 0.0
    %1198 = vmatprep.subr.mxu0 0.0
    %1199 = vmatpush1.msra.mxu0 0.0
    %1200 = vmatprep.subr.mxu0 0.0
    %1201 = vmatpush1.msra.mxu0 0.0
    %1202 = vmatprep.subr.mxu0 0.0
    %1203 = vmatpush1.msra.mxu0 0.0
    %1204 = vmatprep.subr.mxu0 0.0
    %1205 = vmatpush1.msra.mxu0 0.0
    %1206 = vmatprep.subr.mxu0 0.0
    %1207 = vmatpush1.msra.mxu0 0.0
    %1208 = vmatprep.subr.mxu0 0.0
    %1209 = vmatpush1.msra.mxu0 0.0
    %1210 = vmatprep.subr.mxu0 0.0
    %1211 = vmatpush1.msra.mxu0 0.0
    %1212 = vmatprep.mubr.f32.mxu0 0.0
    %1213 = vmatmul.mubr.f32.gmra.mrb[0].mxu0 %v1146
    %v1214 = vpop.f32.mrb[0].mxu0
    %v1215 = vadd.f32 0.0, %v1214
    %v1216 = vpop.f32.mrb[0].mxu0
    %1217 = vdwg.mxu0
    %v1218 = vadd.f32 %v925, %v1215
    %1220 = vrot.lane.b32.xlu0 %v1141, 32
    %v1221 = vpop.permute.xlu0 %1220
    %v1222 = vsel %vm255, %v1221, 0
    %1224 = vmatprep.subr.mxu0 0.0
    %1225 = vmatpush1.msra.mxu0 %v241
    %1226 = vmatprep.subr.mxu0 0.0
    %1227 = vmatpush1.msra.mxu0 %v242
    %1228 = vmatprep.subr.mxu0 0.0
    %1229 = vmatpush1.msra.mxu0 %v243
    %1230 = vmatprep.subr.mxu0 0.0
    %1231 = vmatpush1.msra.mxu0 %v244
    %1232 = vmatprep.subr.mxu0 0.0
    %1233 = vmatpush1.msra.mxu0 0.0
    %1234 = vmatprep.subr.mxu0 0.0
    %1235 = vmatpush1.msra.mxu0 0.0
    %1236 = vmatprep.subr.mxu0 0.0
    %1237 = vmatpush1.msra.mxu0 0.0
    %1238 = vmatprep.subr.mxu0 0.0
    %1239 = vmatpush1.msra.mxu0 0.0
    %1240 = vmatprep.subr.mxu0 0.0
    %1241 = vmatpush1.msra.mxu0 0.0
    %1242 = vmatprep.subr.mxu0 0.0
    %1243 = vmatpush1.msra.mxu0 0.0
    %1244 = vmatprep.subr.mxu0 0.0
    %1245 = vmatpush1.msra.mxu0 0.0
    %1246 = vmatprep.subr.mxu0 0.0
    %1247 = vmatpush1.msra.mxu0 0.0
    %1248 = vmatprep.subr.mxu0 0.0
    %1249 = vmatpush1.msra.mxu0 0.0
    %1250 = vmatprep.subr.mxu0 0.0
    %1251 = vmatpush1.msra.mxu0 0.0
    %1252 = vmatprep.subr.mxu0 0.0
    %1253 = vmatpush1.msra.mxu0 0.0
    %1254 = vmatprep.subr.mxu0 0.0
    %1255 = vmatpush1.msra.mxu0 0.0
    %1256 = vmatprep.subr.mxu0 0.0
    %1257 = vmatpush1.msra.mxu0 0.0
    %1258 = vmatprep.subr.mxu0 0.0
    %1259 = vmatpush1.msra.mxu0 0.0
    %1260 = vmatprep.subr.mxu0 0.0
    %1261 = vmatpush1.msra.mxu0 0.0
    %1262 = vmatprep.subr.mxu0 0.0
    %1263 = vmatpush1.msra.mxu0 0.0
    %1264 = vmatprep.subr.mxu0 0.0
    %1265 = vmatpush1.msra.mxu0 0.0
    %1266 = vmatprep.subr.mxu0 0.0
    %1267 = vmatpush1.msra.mxu0 0.0
    %1268 = vmatprep.subr.mxu0 0.0
    %1269 = vmatpush1.msra.mxu0 0.0
    %1270 = vmatprep.subr.mxu0 0.0
    %1271 = vmatpush1.msra.mxu0 0.0
    %1272 = vmatprep.subr.mxu0 0.0
    %1273 = vmatpush1.msra.mxu0 0.0
    %1274 = vmatprep.subr.mxu0 0.0
    %1275 = vmatpush1.msra.mxu0 0.0
    %1276 = vmatprep.subr.mxu0 0.0
    %1277 = vmatpush1.msra.mxu0 0.0
    %1278 = vmatprep.subr.mxu0 0.0
    %1279 = vmatpush1.msra.mxu0 0.0
    %1280 = vmatprep.subr.mxu0 0.0
    %1281 = vmatpush1.msra.mxu0 0.0
    %1282 = vmatprep.subr.mxu0 0.0
    %1283 = vmatpush1.msra.mxu0 0.0
    %1284 = vmatprep.subr.mxu0 0.0
    %1285 = vmatpush1.msra.mxu0 0.0
    %1286 = vmatprep.subr.mxu0 0.0
    %1287 = vmatpush1.msra.mxu0 0.0
    %1288 = vmatprep.mubr.f32.mxu0 0.0
    %1289 = vmatmul.mubr.f32.gmra.mrb[0].mxu0 %v1222
    %v1290 = vpop.f32.mrb[0].mxu0
    %v1291 = vadd.f32 0.0, %v1290
    %v1292 = vpop.f32.mrb[0].mxu0
    %1293 = vdwg.mxu0
    %v1294 = vadd.f32 %v921, %v1291
    %v1295 = vxor.u32 %v1218, 2147483648
    %v1296 = vmul.f32 %v1295, 1.442695
    %v1297 = vpow.pop %v1296
    %v1298 = vadd.f32 %v1297, 1.0
    %v1299 = vrcp.pop %v1298
    %v1300 = vmul.f32 1.0, %v1299
    %v1301 = vtanh.pop %v1218
    %v1302 = vmul.f32 %v1300, %v1135
    %1304 = vrot.lane.b32.xlu0 %v1301, 64
    %v1305 = vpop.permute.xlu0 %1304
    %v1307 = vmul.f32 %v1300, %v1305
    %1309 = vrot.lane.b32.xlu0 %v1307, 32
    %v1310 = vpop.permute.xlu0 %1309
    %v1312 = vadd.f32 %v1302, %v1310
    %v1313 = vtanh.pop %v1312
    %1315 = vrot.lane.b32.xlu0 %v1313, 64
    %v1316 = vpop.permute.xlu0 %1315
    %v1318 = vmul.f32 %v1300, %v1316
    %v1319 = vxor.u32 %v1294, 2147483648
    %v1320 = vmul.f32 %v1319, 1.442695
    %v1321 = vpow.pop %v1320
    %v1322 = vadd.f32 %v1321, 1.0
    %v1323 = vrcp.pop %v1322
    %v1324 = vmul.f32 1.0, %v1323
    %v1325 = vtanh.pop %v1294
    %v1326 = vmul.f32 %v1324, %v1142
    %1328 = vrot.lane.b32.xlu0 %v1325, 64
    %v1329 = vpop.permute.xlu0 %1328
    %v1331 = vmul.f32 %v1324, %v1329
    %1333 = vrot.lane.b32.xlu0 %v1331, 32
    %v1334 = vpop.permute.xlu0 %1333
    %v1336 = vadd.f32 %v1326, %v1334
    %v1337 = vtanh.pop %v1336
    %1339 = vrot.lane.b32.xlu0 %v1337, 64
    %v1340 = vpop.permute.xlu0 %1339
    %v1342 = vmul.f32 %v1324, %v1340
    %v1343 = vsel %vm1140, %v1318, %v1134
    %v1344 = vsel %vm1140, %v1312, %v1135
    %v1345 = vsel %vm1133, %v1342, %v1141
    %v1346 = vsel %vm1133, %v1336, %v1142
    %1348 = vrot.lane.b32.xlu0 %v1343, 32
    %v1349 = vpop.permute.xlu0 %1348
    %v1350 = vsel %vm255, %v1349, 0
    %1352 = vmatprep.subr.mxu0 0.0
    %1353 = vmatpush1.msra.mxu0 %v237
    %1354 = vmatprep.subr.mxu0 0.0
    %1355 = vmatpush1.msra.mxu0 %v238
    %1356 = vmatprep.subr.mxu0 0.0
    %1357 = vmatpush1.msra.mxu0 %v239
    %1358 = vmatprep.subr.mxu0 0.0
    %1359 = vmatpush1.msra.mxu0 %v240
    %1360 = vmatprep.subr.mxu0 0.0
    %1361 = vmatpush1.msra.mxu0 0.0
    %1362 = vmatprep.subr.mxu0 0.0
    %1363 = vmatpush1.msra.mxu0 0.0
    %1364 = vmatprep.subr.mxu0 0.0
    %1365 = vmatpush1.msra.mxu0 0.0
    %1366 = vmatprep.subr.mxu0 0.0
    %1367 = vmatpush1.msra.mxu0 0.0
    %1368 = vmatprep.subr.mxu0 0.0
    %1369 = vmatpush1.msra.mxu0 0.0
    %1370 = vmatprep.subr.mxu0 0.0
    %1371 = vmatpush1.msra.mxu0 0.0
    %1372 = vmatprep.subr.mxu0 0.0
    %1373 = vmatpush1.msra.mxu0 0.0
    %1374 = vmatprep.subr.mxu0 0.0
    %1375 = vmatpush1.msra.mxu0 0.0
    %1376 = vmatprep.subr.mxu0 0.0
    %1377 = vmatpush1.msra.mxu0 0.0
    %1378 = vmatprep.subr.mxu0 0.0
    %1379 = vmatpush1.msra.mxu0 0.0
    %1380 = vmatprep.subr.mxu0 0.0
    %1381 = vmatpush1.msra.mxu0 0.0
    %1382 = vmatprep.subr.mxu0 0.0
    %1383 = vmatpush1.msra.mxu0 0.0
    %1384 = vmatprep.subr.mxu0 0.0
    %1385 = vmatpush1.msra.mxu0 0.0
    %1386 = vmatprep.subr.mxu0 0.0
    %1387 = vmatpush1.msra.mxu0 0.0
    %1388 = vmatprep.subr.mxu0 0.0
    %1389 = vmatpush1.msra.mxu0 0.0
    %1390 = vmatprep.subr.mxu0 0.0
    %1391 = vmatpush1.msra.mxu0 0.0
    %1392 = vmatprep.subr.mxu0 0.0
    %1393 = vmatpush1.msra.mxu0 0.0
    %1394 = vmatprep.subr.mxu0 0.0
    %1395 = vmatpush1.msra.mxu0 0.0
    %1396 = vmatprep.subr.mxu0 0.0
    %1397 = vmatpush1.msra.mxu0 0.0
    %1398 = vmatprep.subr.mxu0 0.0
    %1399 = vmatpush1.msra.mxu0 0.0
    %1400 = vmatprep.subr.mxu0 0.0
    %1401 = vmatpush1.msra.mxu0 0.0
    %1402 = vmatprep.subr.mxu0 0.0
    %1403 = vmatpush1.msra.mxu0 0.0
    %1404 = vmatprep.subr.mxu0 0.0
    %1405 = vmatpush1.msra.mxu0 0.0
    %1406 = vmatprep.subr.mxu0 0.0
    %1407 = vmatpush1.msra.mxu0 0.0
    %1408 = vmatprep.subr.mxu0 0.0
    %1409 = vmatpush1.msra.mxu0 0.0
    %1410 = vmatprep.subr.mxu0 0.0
    %1411 = vmatpush1.msra.mxu0 0.0
    %1412 = vmatprep.subr.mxu0 0.0
    %1413 = vmatpush1.msra.mxu0 0.0
    %1414 = vmatprep.subr.mxu0 0.0
    %1415 = vmatpush1.msra.mxu0 0.0
    %1416 = vmatprep.mubr.f32.mxu0 0.0
    %1417 = vmatmul.mubr.f32.gmra.mrb[0].mxu0 %v1350
    %v1418 = vpop.f32.mrb[0].mxu0
    %v1419 = vadd.f32 0.0, %v1418
    %v1420 = vpop.f32.mrb[0].mxu0
    %1421 = vdwg.mxu0
    %v1422 = vadd.f32 %v699, %v1419
    %1424 = vrot.lane.b32.xlu0 %v1345, 32
    %v1425 = vpop.permute.xlu0 %1424
    %v1426 = vsel %vm255, %v1425, 0
    %1428 = vmatprep.subr.mxu0 0.0
    %1429 = vmatpush1.msra.mxu0 %v241
    %1430 = vmatprep.subr.mxu0 0.0
    %1431 = vmatpush1.msra.mxu0 %v242
    %1432 = vmatprep.subr.mxu0 0.0
    %1433 = vmatpush1.msra.mxu0 %v243
    %1434 = vmatprep.subr.mxu0 0.0
    %1435 = vmatpush1.msra.mxu0 %v244
    %1436 = vmatprep.subr.mxu0 0.0
    %1437 = vmatpush1.msra.mxu0 0.0
    %1438 = vmatprep.subr.mxu0 0.0
    %1439 = vmatpush1.msra.mxu0 0.0
    %1440 = vmatprep.subr.mxu0 0.0
    %1441 = vmatpush1.msra.mxu0 0.0
    %1442 = vmatprep.subr.mxu0 0.0
    %1443 = vmatpush1.msra.mxu0 0.0
    %1444 = vmatprep.subr.mxu0 0.0
    %1445 = vmatpush1.msra.mxu0 0.0
    %1446 = vmatprep.subr.mxu0 0.0
    %1447 = vmatpush1.msra.mxu0 0.0
    %1448 = vmatprep.subr.mxu0 0.0
    %1449 = vmatpush1.msra.mxu0 0.0
    %1450 = vmatprep.subr.mxu0 0.0
    %1451 = vmatpush1.msra.mxu0 0.0
    %1452 = vmatprep.subr.mxu0 0.0
    %1453 = vmatpush1.msra.mxu0 0.0
    %1454 = vmatprep.subr.mxu0 0.0
    %1455 = vmatpush1.msra.mxu0 0.0
    %1456 = vmatprep.subr.mxu0 0.0
    %1457 = vmatpush1.msra.mxu0 0.0
    %1458 = vmatprep.subr.mxu0 0.0
    %1459 = vmatpush1.msra.mxu0 0.0
    %1460 = vmatprep.subr.mxu0 0.0
    %1461 = vmatpush1.msra.mxu0 0.0
    %1462 = vmatprep.subr.mxu0 0.0
    %1463 = vmatpush1.msra.mxu0 0.0
    %1464 = vmatprep.subr.mxu0 0.0
    %1465 = vmatpush1.msra.mxu0 0.0
    %1466 = vmatprep.subr.mxu0 0.0
    %1467 = vmatpush1.msra.mxu0 0.0
    %1468 = vmatprep.subr.mxu0 0.0
    %1469 = vmatpush1.msra.mxu0 0.0
    %1470 = vmatprep.subr.mxu0 0.0
    %1471 = vmatpush1.msra.mxu0 0.0
    %1472 = vmatprep.subr.mxu0 0.0
    %1473 = vmatpush1.msra.mxu0 0.0
    %1474 = vmatprep.subr.mxu0 0.0
    %1475 = vmatpush1.msra.mxu0 0.0
    %1476 = vmatprep.subr.mxu0 0.0
    %1477 = vmatpush1.msra.mxu0 0.0
    %1478 = vmatprep.subr.mxu0 0.0
    %1479 = vmatpush1.msra.mxu0 0.0
    %1480 = vmatprep.subr.mxu0 0.0
    %1481 = vmatpush1.msra.mxu0 0.0
    %1482 = vmatprep.subr.mxu0 0.0
    %1483 = vmatpush1.msra.mxu0 0.0
    %1484 = vmatprep.subr.mxu0 0.0
    %1485 = vmatpush1.msra.mxu0 0.0
    %1486 = vmatprep.subr.mxu0 0.0
    %1487 = vmatpush1.msra.mxu0 0.0
    %1488 = vmatprep.subr.mxu0 0.0
    %1489 = vmatpush1.msra.mxu0 0.0
    %1490 = vmatprep.subr.mxu0 0.0
    %1491 = vmatpush1.msra.mxu0 0.0
    %1492 = vmatprep.mubr.f32.mxu0 0.0
    %1493 = vmatmul.mubr.f32.gmra.mrb[0].mxu0 %v1426
    %v1494 = vpop.f32.mrb[0].mxu0
    %v1495 = vadd.f32 0.0, %v1494
    %v1496 = vpop.f32.mrb[0].mxu0
    %1497 = vdwg.mxu0
    %v1498 = vadd.f32 %v695, %v1495
    %v1499 = vxor.u32 %v1422, 2147483648
    %v1500 = vmul.f32 %v1499, 1.442695
    %v1501 = vpow.pop %v1500
    %v1502 = vadd.f32 %v1501, 1.0
    %v1503 = vrcp.pop %v1502
    %v1504 = vmul.f32 1.0, %v1503
    %v1505 = vtanh.pop %v1422
    %v1506 = vmul.f32 %v1504, %v1344
    %1508 = vrot.lane.b32.xlu0 %v1505, 64
    %v1509 = vpop.permute.xlu0 %1508
    %v1511 = vmul.f32 %v1504, %v1509
    %1513 = vrot.lane.b32.xlu0 %v1511, 32
    %v1514 = vpop.permute.xlu0 %1513
    %v1516 = vadd.f32 %v1506, %v1514
    %v1517 = vtanh.pop %v1516
    %1519 = vrot.lane.b32.xlu0 %v1517, 64
    %v1520 = vpop.permute.xlu0 %1519
    %v1522 = vmul.f32 %v1504, %v1520
    %v1523 = vxor.u32 %v1498, 2147483648
    %v1524 = vmul.f32 %v1523, 1.442695
    %v1525 = vpow.pop %v1524
    %v1526 = vadd.f32 %v1525, 1.0
    %v1527 = vrcp.pop %v1526
    %v1528 = vmul.f32 1.0, %v1527
    %v1529 = vtanh.pop %v1498
    %v1530 = vmul.f32 %v1528, %v1346
    %1532 = vrot.lane.b32.xlu0 %v1529, 64
    %v1533 = vpop.permute.xlu0 %1532
    %v1535 = vmul.f32 %v1528, %v1533
    %1537 = vrot.lane.b32.xlu0 %v1535, 32
    %v1538 = vpop.permute.xlu0 %1537
    %v1540 = vadd.f32 %v1530, %v1538
    %v1541 = vtanh.pop %v1540
    %1543 = vrot.lane.b32.xlu0 %v1541, 64
    %v1544 = vpop.permute.xlu0 %1543
    %v1546 = vmul.f32 %v1528, %v1544
    %v1547 = vsel %vm914, %v1522, %v1343
    %v1548 = vsel %vm914, %v1516, %v1344
    %v1549 = vsel %vm907, %v1546, %v1345
    %v1550 = vsel %vm907, %v1540, %v1346
    %1552 = vrot.lane.b32.xlu0 %v1547, 32
    %v1553 = vpop.permute.xlu0 %1552
    %v1554 = vsel %vm255, %v1553, 0
    %1556 = vmatprep.subr.mxu0 0.0
    %1557 = vmatpush1.msra.mxu0 %v237
    %1558 = vmatprep.subr.mxu0 0.0
    %1559 = vmatpush1.msra.mxu0 %v238
    %1560 = vmatprep.subr.mxu0 0.0
    %1561 = vmatpush1.msra.mxu0 %v239
    %1562 = vmatprep.subr.mxu0 0.0
    %1563 = vmatpush1.msra.mxu0 %v240
    %1564 = vmatprep.subr.mxu0 0.0
    %1565 = vmatpush1.msra.mxu0 0.0
    %1566 = vmatprep.subr.mxu0 0.0
    %1567 = vmatpush1.msra.mxu0 0.0
    %1568 = vmatprep.subr.mxu0 0.0
    %1569 = vmatpush1.msra.mxu0 0.0
    %1570 = vmatprep.subr.mxu0 0.0
    %1571 = vmatpush1.msra.mxu0 0.0
    %1572 = vmatprep.subr.mxu0 0.0
    %1573 = vmatpush1.msra.mxu0 0.0
    %1574 = vmatprep.subr.mxu0 0.0
    %1575 = vmatpush1.msra.mxu0 0.0
    %1576 = vmatprep.subr.mxu0 0.0
    %1577 = vmatpush1.msra.mxu0 0.0
    %1578 = vmatprep.subr.mxu0 0.0
    %1579 = vmatpush1.msra.mxu0 0.0
    %1580 = vmatprep.subr.mxu0 0.0
    %1581 = vmatpush1.msra.mxu0 0.0
    %1582 = vmatprep.subr.mxu0 0.0
    %1583 = vmatpush1.msra.mxu0 0.0
    %1584 = vmatprep.subr.mxu0 0.0
    %1585 = vmatpush1.msra.mxu0 0.0
    %1586 = vmatprep.subr.mxu0 0.0
    %1587 = vmatpush1.msra.mxu0 0.0
    %1588 = vmatprep.subr.mxu0 0.0
    %1589 = vmatpush1.msra.mxu0 0.0
    %1590 = vmatprep.subr.mxu0 0.0
    %1591 = vmatpush1.msra.mxu0 0.0
    %1592 = vmatprep.subr.mxu0 0.0
    %1593 = vmatpush1.msra.mxu0 0.0
    %1594 = vmatprep.subr.mxu0 0.0
    %1595 = vmatpush1.msra.mxu0 0.0
    %1596 = vmatprep.subr.mxu0 0.0
    %1597 = vmatpush1.msra.mxu0 0.0
    %1598 = vmatprep.subr.mxu0 0.0
    %1599 = vmatpush1.msra.mxu0 0.0
    %1600 = vmatprep.subr.mxu0 0.0
    %1601 = vmatpush1.msra.mxu0 0.0
    %1602 = vmatprep.subr.mxu0 0.0
    %1603 = vmatpush1.msra.mxu0 0.0
    %1604 = vmatprep.subr.mxu0 0.0
    %1605 = vmatpush1.msra.mxu0 0.0
    %1606 = vmatprep.subr.mxu0 0.0
    %1607 = vmatpush1.msra.mxu0 0.0
    %1608 = vmatprep.subr.mxu0 0.0
    %1609 = vmatpush1.msra.mxu0 0.0
    %1610 = vmatprep.subr.mxu0 0.0
    %1611 = vmatpush1.msra.mxu0 0.0
    %1612 = vmatprep.subr.mxu0 0.0
    %1613 = vmatpush1.msra.mxu0 0.0
    %1614 = vmatprep.subr.mxu0 0.0
    %1615 = vmatpush1.msra.mxu0 0.0
    %1616 = vmatprep.subr.mxu0 0.0
    %1617 = vmatpush1.msra.mxu0 0.0
    %1618 = vmatprep.subr.mxu0 0.0
    %1619 = vmatpush1.msra.mxu0 0.0
    %1620 = vmatprep.mubr.f32.mxu0 0.0
    %1621 = vmatmul.mubr.f32.gmra.mrb[0].mxu0 %v1554
    %v1622 = vpop.f32.mrb[0].mxu0
    %v1623 = vadd.f32 0.0, %v1622
    %v1624 = vpop.f32.mrb[0].mxu0
    %1625 = vdwg.mxu0
    %v1626 = vadd.f32 %v473, %v1623
    %1628 = vrot.lane.b32.xlu0 %v1549, 32
    %v1629 = vpop.permute.xlu0 %1628
    %v1630 = vsel %vm255, %v1629, 0
    %1632 = vmatprep.subr.mxu0 0.0
    %1633 = vmatpush1.msra.mxu0 %v241
    %1634 = vmatprep.subr.mxu0 0.0
    %1635 = vmatpush1.msra.mxu0 %v242
    %1636 = vmatprep.subr.mxu0 0.0
    %1637 = vmatpush1.msra.mxu0 %v243
    %1638 = vmatprep.subr.mxu0 0.0
    %1639 = vmatpush1.msra.mxu0 %v244
    %1640 = vmatprep.subr.mxu0 0.0
    %1641 = vmatpush1.msra.mxu0 0.0
    %1642 = vmatprep.subr.mxu0 0.0
    %1643 = vmatpush1.msra.mxu0 0.0
    %1644 = vmatprep.subr.mxu0 0.0
    %1645 = vmatpush1.msra.mxu0 0.0
    %1646 = vmatprep.subr.mxu0 0.0
    %1647 = vmatpush1.msra.mxu0 0.0
    %1648 = vmatprep.subr.mxu0 0.0
    %1649 = vmatpush1.msra.mxu0 0.0
    %1650 = vmatprep.subr.mxu0 0.0
    %1651 = vmatpush1.msra.mxu0 0.0
    %1652 = vmatprep.subr.mxu0 0.0
    %1653 = vmatpush1.msra.mxu0 0.0
    %1654 = vmatprep.subr.mxu0 0.0
    %1655 = vmatpush1.msra.mxu0 0.0
    %1656 = vmatprep.subr.mxu0 0.0
    %1657 = vmatpush1.msra.mxu0 0.0
    %1658 = vmatprep.subr.mxu0 0.0
    %1659 = vmatpush1.msra.mxu0 0.0
    %1660 = vmatprep.subr.mxu0 0.0
    %1661 = vmatpush1.msra.mxu0 0.0
    %1662 = vmatprep.subr.mxu0 0.0
    %1663 = vmatpush1.msra.mxu0 0.0
    %1664 = vmatprep.subr.mxu0 0.0
    %1665 = vmatpush1.msra.mxu0 0.0
    %1666 = vmatprep.subr.mxu0 0.0
    %1667 = vmatpush1.msra.mxu0 0.0
    %1668 = vmatprep.subr.mxu0 0.0
    %1669 = vmatpush1.msra.mxu0 0.0
    %1670 = vmatprep.subr.mxu0 0.0
    %1671 = vmatpush1.msra.mxu0 0.0
    %1672 = vmatprep.subr.mxu0 0.0
    %1673 = vmatpush1.msra.mxu0 0.0
    %1674 = vmatprep.subr.mxu0 0.0
    %1675 = vmatpush1.msra.mxu0 0.0
    %1676 = vmatprep.subr.mxu0 0.0
    %1677 = vmatpush1.msra.mxu0 0.0
    %1678 = vmatprep.subr.mxu0 0.0
    %1679 = vmatpush1.msra.mxu0 0.0
    %1680 = vmatprep.subr.mxu0 0.0
    %1681 = vmatpush1.msra.mxu0 0.0
    %1682 = vmatprep.subr.mxu0 0.0
    %1683 = vmatpush1.msra.mxu0 0.0
    %1684 = vmatprep.subr.mxu0 0.0
    %1685 = vmatpush1.msra.mxu0 0.0
    %1686 = vmatprep.subr.mxu0 0.0
    %1687 = vmatpush1.msra.mxu0 0.0
    %1688 = vmatprep.subr.mxu0 0.0
    %1689 = vmatpush1.msra.mxu0 0.0
    %1690 = vmatprep.subr.mxu0 0.0
    %1691 = vmatpush1.msra.mxu0 0.0
    %1692 = vmatprep.subr.mxu0 0.0
    %1693 = vmatpush1.msra.mxu0 0.0
    %1694 = vmatprep.subr.mxu0 0.0
    %1695 = vmatpush1.msra.mxu0 0.0
    %1696 = vmatprep.mubr.f32.mxu0 0.0
    %1697 = vmatmul.mubr.f32.gmra.mrb[0].mxu0 %v1630
    %v1698 = vpop.f32.mrb[0].mxu0
    %v1699 = vadd.f32 0.0, %v1698
    %v1700 = vpop.f32.mrb[0].mxu0
    %1701 = vdwg.mxu0
    %v1702 = vadd.f32 %v469, %v1699
    %v1703 = vxor.u32 %v1626, 2147483648
    %v1704 = vmul.f32 %v1703, 1.442695
    %v1705 = vpow.pop %v1704
    %v1706 = vadd.f32 %v1705, 1.0
    %v1707 = vrcp.pop %v1706
    %v1708 = vmul.f32 1.0, %v1707
    %v1709 = vtanh.pop %v1626
    %v1710 = vmul.f32 %v1708, %v1548
    %1712 = vrot.lane.b32.xlu0 %v1709, 64
    %v1713 = vpop.permute.xlu0 %1712
    %v1715 = vmul.f32 %v1708, %v1713
    %1717 = vrot.lane.b32.xlu0 %v1715, 32
    %v1718 = vpop.permute.xlu0 %1717
    %v1720 = vadd.f32 %v1710, %v1718
    %v1721 = vtanh.pop %v1720
    %1723 = vrot.lane.b32.xlu0 %v1721, 64
    %v1724 = vpop.permute.xlu0 %1723
    %v1726 = vmul.f32 %v1708, %v1724
    %v1727 = vxor.u32 %v1702, 2147483648
    %v1728 = vmul.f32 %v1727, 1.442695
    %v1729 = vpow.pop %v1728
    %v1730 = vadd.f32 %v1729, 1.0
    %v1731 = vrcp.pop %v1730
    %v1732 = vmul.f32 1.0, %v1731
    %v1733 = vtanh.pop %v1702
    %v1734 = vmul.f32 %v1732, %v1550
    %1736 = vrot.lane.b32.xlu0 %v1733, 64
    %v1737 = vpop.permute.xlu0 %1736
    %v1739 = vmul.f32 %v1732, %v1737
    %1741 = vrot.lane.b32.xlu0 %v1739, 32
    %v1742 = vpop.permute.xlu0 %1741
    %v1744 = vadd.f32 %v1734, %v1742
    %v1745 = vtanh.pop %v1744
    %1747 = vrot.lane.b32.xlu0 %v1745, 64
    %v1748 = vpop.permute.xlu0 %1747
    %v1750 = vmul.f32 %v1732, %v1748
    %v1751 = vsel %vm688, %v1726, %v1547
    %v1752 = vsel %vm688, %v1720, %v1548
    %v1753 = vsel %vm681, %v1750, %v1549
    %v1754 = vsel %vm681, %v1744, %v1550
    %1756 = vrot.lane.b32.xlu0 %v1751, 32
    %v1757 = vpop.permute.xlu0 %1756
    %v1758 = vsel %vm255, %v1757, 0
    %1760 = vmatprep.subr.mxu0 0.0
    %1761 = vmatpush1.msra.mxu0 %v237
    %1762 = vmatprep.subr.mxu0 0.0
    %1763 = vmatpush1.msra.mxu0 %v238
    %1764 = vmatprep.subr.mxu0 0.0
    %1765 = vmatpush1.msra.mxu0 %v239
    %1766 = vmatprep.subr.mxu0 0.0
    %1767 = vmatpush1.msra.mxu0 %v240
    %1768 = vmatprep.subr.mxu0 0.0
    %1769 = vmatpush1.msra.mxu0 0.0
    %1770 = vmatprep.subr.mxu0 0.0
    %1771 = vmatpush1.msra.mxu0 0.0
    %1772 = vmatprep.subr.mxu0 0.0
    %1773 = vmatpush1.msra.mxu0 0.0
    %1774 = vmatprep.subr.mxu0 0.0
    %1775 = vmatpush1.msra.mxu0 0.0
    %1776 = vmatprep.subr.mxu0 0.0
    %1777 = vmatpush1.msra.mxu0 0.0
    %1778 = vmatprep.subr.mxu0 0.0
    %1779 = vmatpush1.msra.mxu0 0.0
    %1780 = vmatprep.subr.mxu0 0.0
    %1781 = vmatpush1.msra.mxu0 0.0
    %1782 = vmatprep.subr.mxu0 0.0
    %1783 = vmatpush1.msra.mxu0 0.0
    %1784 = vmatprep.subr.mxu0 0.0
    %1785 = vmatpush1.msra.mxu0 0.0
    %1786 = vmatprep.subr.mxu0 0.0
    %1787 = vmatpush1.msra.mxu0 0.0
    %1788 = vmatprep.subr.mxu0 0.0
    %1789 = vmatpush1.msra.mxu0 0.0
    %1790 = vmatprep.subr.mxu0 0.0
    %1791 = vmatpush1.msra.mxu0 0.0
    %1792 = vmatprep.subr.mxu0 0.0
    %1793 = vmatpush1.msra.mxu0 0.0
    %1794 = vmatprep.subr.mxu0 0.0
    %1795 = vmatpush1.msra.mxu0 0.0
    %1796 = vmatprep.subr.mxu0 0.0
    %1797 = vmatpush1.msra.mxu0 0.0
    %1798 = vmatprep.subr.mxu0 0.0
    %1799 = vmatpush1.msra.mxu0 0.0
    %1800 = vmatprep.subr.mxu0 0.0
    %1801 = vmatpush1.msra.mxu0 0.0
    %1802 = vmatprep.subr.mxu0 0.0
    %1803 = vmatpush1.msra.mxu0 0.0
    %1804 = vmatprep.subr.mxu0 0.0
    %1805 = vmatpush1.msra.mxu0 0.0
    %1806 = vmatprep.subr.mxu0 0.0
    %1807 = vmatpush1.msra.mxu0 0.0
    %1808 = vmatprep.subr.mxu0 0.0
    %1809 = vmatpush1.msra.mxu0 0.0
    %1810 = vmatprep.subr.mxu0 0.0
    %1811 = vmatpush1.msra.mxu0 0.0
    %1812 = vmatprep.subr.mxu0 0.0
    %1813 = vmatpush1.msra.mxu0 0.0
    %1814 = vmatprep.subr.mxu0 0.0
    %1815 = vmatpush1.msra.mxu0 0.0
    %1816 = vmatprep.subr.mxu0 0.0
    %1817 = vmatpush1.msra.mxu0 0.0
    %1818 = vmatprep.subr.mxu0 0.0
    %1819 = vmatpush1.msra.mxu0 0.0
    %1820 = vmatprep.subr.mxu0 0.0
    %1821 = vmatpush1.msra.mxu0 0.0
    %1822 = vmatprep.subr.mxu0 0.0
    %1823 = vmatpush1.msra.mxu0 0.0
    %1824 = vmatprep.mubr.f32.mxu0 0.0
    %1825 = vmatmul.mubr.f32.gmra.mrb[0].mxu0 %v1758
    %v1826 = vpop.f32.mrb[0].mxu0
    %v1827 = vadd.f32 0.0, %v1826
    %v1828 = vpop.f32.mrb[0].mxu0
    %1829 = vdwg.mxu0
    %v1830 = vadd.f32 %v253, %v1827
    %1832 = vrot.lane.b32.xlu0 %v1753, 32
    %v1833 = vpop.permute.xlu0 %1832
    %v1834 = vsel %vm255, %v1833, 0
    %1836 = vmatprep.subr.mxu0 0.0
    %1837 = vmatpush1.msra.mxu0 %v241
    %1838 = vmatprep.subr.mxu0 0.0
    %1839 = vmatpush1.msra.mxu0 %v242
    %1840 = vmatprep.subr.mxu0 0.0
    %1841 = vmatpush1.msra.mxu0 %v243
    %1842 = vmatprep.subr.mxu0 0.0
    %1843 = vmatpush1.msra.mxu0 %v244
    %1844 = vmatprep.subr.mxu0 0.0
    %1845 = vmatpush1.msra.mxu0 0.0
    %1846 = vmatprep.subr.mxu0 0.0
    %1847 = vmatpush1.msra.mxu0 0.0
    %1848 = vmatprep.subr.mxu0 0.0
    %1849 = vmatpush1.msra.mxu0 0.0
    %1850 = vmatprep.subr.mxu0 0.0
    %1851 = vmatpush1.msra.mxu0 0.0
    %1852 = vmatprep.subr.mxu0 0.0
    %1853 = vmatpush1.msra.mxu0 0.0
    %1854 = vmatprep.subr.mxu0 0.0
    %1855 = vmatpush1.msra.mxu0 0.0
    %1856 = vmatprep.subr.mxu0 0.0
    %1857 = vmatpush1.msra.mxu0 0.0
    %1858 = vmatprep.subr.mxu0 0.0
    %1859 = vmatpush1.msra.mxu0 0.0
    %1860 = vmatprep.subr.mxu0 0.0
    %1861 = vmatpush1.msra.mxu0 0.0
    %1862 = vmatprep.subr.mxu0 0.0
    %1863 = vmatpush1.msra.mxu0 0.0
    %1864 = vmatprep.subr.mxu0 0.0
    %1865 = vmatpush1.msra.mxu0 0.0
    %1866 = vmatprep.subr.mxu0 0.0
    %1867 = vmatpush1.msra.mxu0 0.0
    %1868 = vmatprep.subr.mxu0 0.0
    %1869 = vmatpush1.msra.mxu0 0.0
    %1870 = vmatprep.subr.mxu0 0.0
    %1871 = vmatpush1.msra.mxu0 0.0
    %1872 = vmatprep.subr.mxu0 0.0
    %1873 = vmatpush1.msra.mxu0 0.0
    %1874 = vmatprep.subr.mxu0 0.0
    %1875 = vmatpush1.msra.mxu0 0.0
    %1876 = vmatprep.subr.mxu0 0.0
    %1877 = vmatpush1.msra.mxu0 0.0
    %1878 = vmatprep.subr.mxu0 0.0
    %1879 = vmatpush1.msra.mxu0 0.0
    %1880 = vmatprep.subr.mxu0 0.0
    %1881 = vmatpush1.msra.mxu0 0.0
    %1882 = vmatprep.subr.mxu0 0.0
    %1883 = vmatpush1.msra.mxu0 0.0
    %1884 = vmatprep.subr.mxu0 0.0
    %1885 = vmatpush1.msra.mxu0 0.0
    %1886 = vmatprep.subr.mxu0 0.0
    %1887 = vmatpush1.msra.mxu0 0.0
    %1888 = vmatprep.subr.mxu0 0.0
    %1889 = vmatpush1.msra.mxu0 0.0
    %1890 = vmatprep.subr.mxu0 0.0
    %1891 = vmatpush1.msra.mxu0 0.0
    %1892 = vmatprep.subr.mxu0 0.0
    %1893 = vmatpush1.msra.mxu0 0.0
    %1894 = vmatprep.subr.mxu0 0.0
    %1895 = vmatpush1.msra.mxu0 0.0
    %1896 = vmatprep.subr.mxu0 0.0
    %1897 = vmatpush1.msra.mxu0 0.0
    %1898 = vmatprep.subr.mxu0 0.0
    %1899 = vmatpush1.msra.mxu0 0.0
    %1900 = vmatprep.mubr.f32.mxu0 0.0
    %1901 = vmatmul.mubr.f32.gmra.mrb[0].mxu0 %v1834
    %v1902 = vpop.f32.mrb[0].mxu0
    %v1903 = vadd.f32 0.0, %v1902
    %v1904 = vpop.f32.mrb[0].mxu0
    %1905 = vdwg.mxu0
    %v1906 = vadd.f32 %v249, %v1903
    %v1907 = vxor.u32 %v1830, 2147483648
    %v1908 = vmul.f32 %v1907, 1.442695
    %v1909 = vpow.pop %v1908
    %v1910 = vadd.f32 %v1909, 1.0
    %v1911 = vrcp.pop %v1910
    %v1912 = vmul.f32 1.0, %v1911
    %v1913 = vtanh.pop %v1830
    %v1914 = vmul.f32 %v1912, %v1752
    %1916 = vrot.lane.b32.xlu0 %v1913, 64
    %v1917 = vpop.permute.xlu0 %1916
    %v1919 = vmul.f32 %v1912, %v1917
    %1921 = vrot.lane.b32.xlu0 %v1919, 32
    %v1922 = vpop.permute.xlu0 %1921
    %v1924 = vadd.f32 %v1914, %v1922
    %v1925 = vtanh.pop %v1924
    %1927 = vrot.lane.b32.xlu0 %v1925, 64
    %v1928 = vpop.permute.xlu0 %1927
    %v1930 = vmul.f32 %v1912, %v1928
    %v1931 = vxor.u32 %v1906, 2147483648
    %v1932 = vmul.f32 %v1931, 1.442695
    %v1933 = vpow.pop %v1932
    %v1934 = vadd.f32 %v1933, 1.0
    %v1935 = vrcp.pop %v1934
    %v1936 = vmul.f32 1.0, %v1935
    %v1937 = vtanh.pop %v1906
    %v1938 = vmul.f32 %v1936, %v1754
    %1940 = vrot.lane.b32.xlu0 %v1937, 64
    %v1941 = vpop.permute.xlu0 %1940
    %v1943 = vmul.f32 %v1936, %v1941
    %1945 = vrot.lane.b32.xlu0 %v1943, 32
    %v1946 = vpop.permute.xlu0 %1945
    %v1948 = vadd.f32 %v1938, %v1946
    %v1949 = vtanh.pop %v1948
    %1951 = vrot.lane.b32.xlu0 %v1949, 64
    %v1952 = vpop.permute.xlu0 %1951
    %v1954 = vmul.f32 %v1936, %v1952
    %v1955 = vsel %vm462, %v1930, %v1751
    %v1956 = vsel %vm455, %v1954, %v1753
    %v1957 = vld [vmem:[#allocation3] sm:$0xff]
    %v1958 = vld [vmem:[#allocation3 + $0x8] sm:$0xff]
    %v1959 = vld [vmem:[#allocation3 + $0x10] sm:$0xff]
    %v1960 = vld [vmem:[#allocation3 + $0x18] sm:$0xff]
    %v1961 = vld [vmem:[#allocation6] sm:$0xff]
    %v1962 = vld [vmem:[#allocation6 + $0x8] sm:$0xff]
    %v1963 = vld [vmem:[#allocation6 + $0x10] sm:$0xff]
    %v1964 = vld [vmem:[#allocation6 + $0x18] sm:$0xff]
    %1966 = vrot.lane.b32.xlu0 %v1956, 32
    %v1967 = vpop.permute.xlu0 %1966
    %v1968 = vsel %vm255, %v1967, 0
    %1970 = vmatprep.subr.mxu0 0.0
    %1971 = vmatpush1.msra.mxu0 %v1961
    %1972 = vmatprep.subr.mxu0 0.0
    %1973 = vmatpush1.msra.mxu0 %v1962
    %1974 = vmatprep.subr.mxu0 0.0
    %1975 = vmatpush1.msra.mxu0 %v1963
    %1976 = vmatprep.subr.mxu0 0.0
    %1977 = vmatpush1.msra.mxu0 %v1964
    %1978 = vmatprep.subr.mxu0 0.0
    %1979 = vmatpush1.msra.mxu0 0.0
    %1980 = vmatprep.subr.mxu0 0.0
    %1981 = vmatpush1.msra.mxu0 0.0
    %1982 = vmatprep.subr.mxu0 0.0
    %1983 = vmatpush1.msra.mxu0 0.0
    %1984 = vmatprep.subr.mxu0 0.0
    %1985 = vmatpush1.msra.mxu0 0.0
    %1986 = vmatprep.subr.mxu0 0.0
    %1987 = vmatpush1.msra.mxu0 0.0
    %1988 = vmatprep.subr.mxu0 0.0
    %1989 = vmatpush1.msra.mxu0 0.0
    %1990 = vmatprep.subr.mxu0 0.0
    %1991 = vmatpush1.msra.mxu0 0.0
    %1992 = vmatprep.subr.mxu0 0.0
    %1993 = vmatpush1.msra.mxu0 0.0
    %1994 = vmatprep.subr.mxu0 0.0
    %1995 = vmatpush1.msra.mxu0 0.0
    %1996 = vmatprep.subr.mxu0 0.0
    %1997 = vmatpush1.msra.mxu0 0.0
    %1998 = vmatprep.subr.mxu0 0.0
    %1999 = vmatpush1.msra.mxu0 0.0
    %2000 = vmatprep.subr.mxu0 0.0
    %2001 = vmatpush1.msra.mxu0 0.0
    %2002 = vmatprep.subr.mxu0 0.0
    %2003 = vmatpush1.msra.mxu0 0.0
    %2004 = vmatprep.subr.mxu0 0.0
    %2005 = vmatpush1.msra.mxu0 0.0
    %2006 = vmatprep.subr.mxu0 0.0
    %2007 = vmatpush1.msra.mxu0 0.0
    %2008 = vmatprep.subr.mxu0 0.0
    %2009 = vmatpush1.msra.mxu0 0.0
    %2010 = vmatprep.subr.mxu0 0.0
    %2011 = vmatpush1.msra.mxu0 0.0
    %2012 = vmatprep.subr.mxu0 0.0
    %2013 = vmatpush1.msra.mxu0 0.0
    %2014 = vmatprep.subr.mxu0 0.0
    %2015 = vmatpush1.msra.mxu0 0.0
    %2016 = vmatprep.subr.mxu0 0.0
    %2017 = vmatpush1.msra.mxu0 0.0
    %2018 = vmatprep.subr.mxu0 0.0
    %2019 = vmatpush1.msra.mxu0 0.0
    %2020 = vmatprep.subr.mxu0 0.0
    %2021 = vmatpush1.msra.mxu0 0.0
    %2022 = vmatprep.subr.mxu0 0.0
    %2023 = vmatpush1.msra.mxu0 0.0
    %2024 = vmatprep.subr.mxu0 0.0
    %2025 = vmatpush1.msra.mxu0 0.0
    %2026 = vmatprep.subr.mxu0 0.0
    %2027 = vmatpush1.msra.mxu0 0.0
    %2028 = vmatprep.subr.mxu0 0.0
    %2029 = vmatpush1.msra.mxu0 0.0
    %2030 = vmatprep.subr.mxu0 0.0
    %2031 = vmatpush1.msra.mxu0 0.0
    %2032 = vmatprep.subr.mxu0 0.0
    %2033 = vmatpush1.msra.mxu0 0.0
    %2034 = vmatprep.mubr.f32.mxu0 0.0
    %2035 = vmatmul.mubr.f32.gmra.mrb[0].mxu0 %v1968
    %v2036 = vpop.f32.mrb[0].mxu0
    %v2037 = vadd.f32 0.0, %v2036
    %v2038 = vpop.f32.mrb[0].mxu0
    %2039 = vdwg.mxu0
    %2041 = vrot.lane.b32.xlu0 %v1955, 32
    %v2042 = vpop.permute.xlu0 %2041
    %v2043 = vsel %vm255, %v2042, 0
    %2045 = vmatprep.subr.mxu0 0.0
    %2046 = vmatpush1.msra.mxu0 %v1957
    %2047 = vmatprep.subr.mxu0 0.0
    %2048 = vmatpush1.msra.mxu0 %v1958
    %2049 = vmatprep.subr.mxu0 0.0
    %2050 = vmatpush1.msra.mxu0 %v1959
    %2051 = vmatprep.subr.mxu0 0.0
    %2052 = vmatpush1.msra.mxu0 %v1960
    %2053 = vmatprep.subr.mxu0 0.0
    %2054 = vmatpush1.msra.mxu0 0.0
    %2055 = vmatprep.subr.mxu0 0.0
    %2056 = vmatpush1.msra.mxu0 0.0
    %2057 = vmatprep.subr.mxu0 0.0
    %2058 = vmatpush1.msra.mxu0 0.0
    %2059 = vmatprep.subr.mxu0 0.0
    %2060 = vmatpush1.msra.mxu0 0.0
    %2061 = vmatprep.subr.mxu0 0.0
    %2062 = vmatpush1.msra.mxu0 0.0
    %2063 = vmatprep.subr.mxu0 0.0
    %2064 = vmatpush1.msra.mxu0 0.0
    %2065 = vmatprep.subr.mxu0 0.0
    %2066 = vmatpush1.msra.mxu0 0.0
    %2067 = vmatprep.subr.mxu0 0.0
    %2068 = vmatpush1.msra.mxu0 0.0
    %2069 = vmatprep.subr.mxu0 0.0
    %2070 = vmatpush1.msra.mxu0 0.0
    %2071 = vmatprep.subr.mxu0 0.0
    %2072 = vmatpush1.msra.mxu0 0.0
    %2073 = vmatprep.subr.mxu0 0.0
    %2074 = vmatpush1.msra.mxu0 0.0
    %2075 = vmatprep.subr.mxu0 0.0
    %2076 = vmatpush1.msra.mxu0 0.0
    %2077 = vmatprep.subr.mxu0 0.0
    %2078 = vmatpush1.msra.mxu0 0.0
    %2079 = vmatprep.subr.mxu0 0.0
    %2080 = vmatpush1.msra.mxu0 0.0
    %2081 = vmatprep.subr.mxu0 0.0
    %2082 = vmatpush1.msra.mxu0 0.0
    %2083 = vmatprep.subr.mxu0 0.0
    %2084 = vmatpush1.msra.mxu0 0.0
    %2085 = vmatprep.subr.mxu0 0.0
    %2086 = vmatpush1.msra.mxu0 0.0
    %2087 = vmatprep.subr.mxu0 0.0
    %2088 = vmatpush1.msra.mxu0 0.0
    %2089 = vmatprep.subr.mxu0 0.0
    %2090 = vmatpush1.msra.mxu0 0.0
    %2091 = vmatprep.subr.mxu0 0.0
    %2092 = vmatpush1.msra.mxu0 0.0
    %2093 = vmatprep.subr.mxu0 0.0
    %2094 = vmatpush1.msra.mxu0 0.0
    %2095 = vmatprep.subr.mxu0 0.0
    %2096 = vmatpush1.msra.mxu0 0.0
    %2097 = vmatprep.subr.mxu0 0.0
    %2098 = vmatpush1.msra.mxu0 0.0
    %2099 = vmatprep.subr.mxu0 0.0
    %2100 = vmatpush1.msra.mxu0 0.0
    %2101 = vmatprep.subr.mxu0 0.0
    %2102 = vmatpush1.msra.mxu0 0.0
    %2103 = vmatprep.subr.mxu0 0.0
    %2104 = vmatpush1.msra.mxu0 0.0
    %2105 = vmatprep.subr.mxu0 0.0
    %2106 = vmatpush1.msra.mxu0 0.0
    %2107 = vmatprep.subr.mxu0 0.0
    %2108 = vmatpush1.msra.mxu0 0.0
    %2109 = vmatprep.mubr.f32.mxu0 0.0
    %2110 = vmatmul.mubr.f32.gmra.mrb[0].mxu0 %v2043
    %v2111 = vpop.f32.mrb[0].mxu0
    %v2112 = vadd.f32 %v2037, %v2111
    %v2113 = vpop.f32.mrb[0].mxu0
    %2114 = vdwg.mxu0
    %2115 = vst.msk [vmem:[#allocation8] sm:$0xff] %vm255, %v2112
    // Predicated region
    $region42: #{tpu_custom_call.1} parent=1 // pred_check
      _
    $region43: #{tpu_custom_call.1} parent=1 // pred_check_branch
      %2117 = sbr.rel (0) target = $region45
    $region44: #{tpu_custom_call.1} parent=1 // pred_region
      %s2119 = ssub.s32 128, 128
      %2120 = vsyncadd [#allocation5], %s2119
      %s2122 = sshll.u32 [#allocation8], 4
      %s2123 = int_to_ptr.vmem [resolvable:$true] %s2122
      %2125 = dma.vmem_to_hbm [thread:$0]  %s2123, 128, %s8, [#allocation5]
    $region45: #{tpu_custom_call.1} parent=1 // pred_fallthru
      _
    // Predicated region
    $region46: #{tpu_custom_call.1} parent=1 // pred_check
      _
    $region47: #{tpu_custom_call.1} parent=1 // pred_check_branch
      %2127 = sbr.rel (0) target = $region49
    $region48: #{tpu_custom_call.1} parent=1 // pred_region
      %2128 = dma.done [#allocation5], 128
    $region49: #{tpu_custom_call.1} parent=1 // pred_fallthru
      _
    %2129 = vsyncpa [#allocation4], 1
    %2130 = vsyncpa [#allocation7], 1
    %2131 = vsyncpa [#allocation5], 1

</llo_original>
